<compile_context>
chip_gen: v7x
topology: tpu7x:2x2x1
jax: 0.10.0
libtpu: 0.0.40
codegen_flags: <defaults>
</compile_context>

<pallas_src>
import functools

import jax
import jax.numpy as jnp
from jax.experimental import pallas as pl
from jax.experimental.pallas import tpu as pltpu

_NEG_BIG = -1e30  # pads logits of fake (padded) classes -> ~0 probability


def _round_up(x, m):
    return (x + m - 1) // m * m


# ---------------------------------------------------------------------------
# Fused RNN kernel: input projection + serial recurrence + output head.
# ---------------------------------------------------------------------------
def _rnn_kernel(x_ref, wx_ref, bih_ref, wh_ref, who_ref, bho_ref, h0_ref,
                y_ref, hfin_ref, h_carry, work,
                *, t_blk, b_blk, t_total, n_class):
    tb = pl.program_id(1)          # time-block index (serial "arbitrary" axis)
    h_pad = wh_ref.shape[0]

    # (Re-)initialize the carried hidden state at t == 0 of every batch block.
    @pl.when(tb == 0)
    def _():
        h_carry[...] = h0_ref[...]

    wh = wh_ref[...]               # resident weights: read once per grid step

    # ---- Phase A: input projection for the whole time-block (one MXU pass,
    #      off the per-timestep serial path).  Staged in VMEM scratch.
    x_blk = x_ref[...].reshape(t_blk * b_blk, -1).astype(wx_ref.dtype)
    xw = (jnp.dot(x_blk, wx_ref[...], preferred_element_type=jnp.float32)
          + bih_ref[...])
    work[...] = xw.reshape(t_blk, b_blk, h_pad)

    # ---- Phase B: the true recurrence (serial over timesteps, unrolled so
    #      the LLO scheduler sees the whole block).
    def step(s, carry):
        h = h_carry[...]
        a = work[s] + jnp.dot(h.astype(wh.dtype), wh,
                              preferred_element_type=jnp.float32)
        hidden = jnp.tanh(a)
        # Mask timesteps beyond the logical sequence length (T padded to T_BLK).
        valid = (tb * t_blk + s) < t_total
        new_h = jnp.where(valid, hidden, h)
        h_carry[...] = new_h
        work[s] = new_h            # reuse the xw slot; it has been consumed
        return carry

    jax.lax.fori_loop(0, t_blk, step, 0, unroll=True)

    # ---- Phase C: output head for the whole time-block (one batched matmul,
    #      lane-dense write into the padded class dimension).
    hid = work[...].reshape(t_blk * b_blk, h_pad).astype(who_ref.dtype)
    o = (jnp.dot(hid, who_ref[...], preferred_element_type=jnp.float32)
         + bho_ref[...])           # padded class cols carry a -1e30 bias
    if n_class == 1:
        # numerically stable sigmoid
        p = jnp.exp(jnp.minimum(o, 0.0)) / (1.0 + jnp.exp(-jnp.abs(o)))
    else:
        m = jnp.max(o, axis=-1, keepdims=True)
        e = jnp.exp(o - m)
        p = e / jnp.sum(e, axis=-1, keepdims=True)
    y_ref[...] = p.reshape(t_blk, b_blk, -1).astype(y_ref.dtype)

    # Final hidden: constant-index output block stays VMEM resident across the
    # time axis; the last write is what lands in HBM.
    hfin_ref[...] = h_carry[...].astype(hfin_ref.dtype)


# ---------------------------------------------------------------------------
# Wrapper
# ---------------------------------------------------------------------------
def compute_rnn_forward(x, pre_state, params, n_class, *, t_blk=8, b_blk=8,
                        weight_dtype=jnp.float32):
    """Pallas equivalent of computeRNN.forward.

    x:         (T, B, F) float32
    pre_state: (B, H) float32 or None
    params:    wx (F,H), wh (H,H), b_ih (H,), w_ho (H,C), b_ho (C,)
               (in2hidden weight split into x-part and h-part, equivalent to
                concat([x_t, h]) @ W_ih)
    returns:   (predict_y (T,B,C), hidden (B,H)) in float32
    """
    T, B, F = x.shape
    H = params["wh"].shape[0]
    C = n_class

    T_pad = _round_up(T, t_blk)
    B_pad = _round_up(B, b_blk)
    H_pad = _round_up(H, 128)
    C_pad = _round_up(C, 128)
    n_tblk = T_pad // t_blk
    n_bblk = B_pad // b_blk

    f32 = jnp.float32
    x_p = jnp.pad(x.astype(f32), ((0, T_pad - T), (0, B_pad - B), (0, 0)))
    if pre_state is None:
        h0_p = jnp.zeros((B_pad, H_pad), f32)
    else:
        h0_p = jnp.pad(pre_state.astype(f32), ((0, B_pad - B), (0, H_pad - H)))

    wx_p = jnp.pad(params["wx"].astype(f32),
                   ((0, 0), (0, H_pad - H))).astype(weight_dtype)
    wh_p = jnp.pad(params["wh"].astype(f32),
                   ((0, H_pad - H), (0, H_pad - H))).astype(weight_dtype)
    who_p = jnp.pad(params["w_ho"].astype(f32),
                    ((0, H_pad - H), (0, C_pad - C))).astype(weight_dtype)
    bih_p = jnp.pad(params["b_ih"].astype(f32).reshape(1, H),
                    ((0, 0), (0, H_pad - H)))
    bho_p = jnp.pad(params["b_ho"].astype(f32).reshape(1, C),
                    ((0, 0), (0, C_pad - C)), constant_values=_NEG_BIG)

    kernel = functools.partial(_rnn_kernel, t_blk=t_blk, b_blk=b_blk,
                               t_total=T, n_class=n_class)

    y_p, h_final_p = pl.pallas_call(
        kernel,
        out_shape=(jax.ShapeDtypeStruct((T_pad, B_pad, C_pad), f32),
                   jax.ShapeDtypeStruct((B_pad, H_pad), f32)),
        grid_spec=pltpu.PrefetchScalarGridSpec(
            num_scalar_prefetch=0,
            grid=(n_bblk, n_tblk),
            in_specs=[
                pl.BlockSpec((t_blk, b_blk, F), lambda b, t: (t, b, 0)),      # x
                pl.BlockSpec((F, H_pad), lambda b, t: (0, 0)),                # Wx
                pl.BlockSpec((1, H_pad), lambda b, t: (0, 0)),                # b_ih
                pl.BlockSpec((H_pad, H_pad), lambda b, t: (0, 0)),            # Wh
                pl.BlockSpec((H_pad, C_pad), lambda b, t: (0, 0)),            # W_ho
                pl.BlockSpec((1, C_pad), lambda b, t: (0, 0)),                # b_ho
                pl.BlockSpec((b_blk, H_pad), lambda b, t: (b, 0)),            # h0
            ],
            out_specs=[
                pl.BlockSpec((t_blk, b_blk, C_pad), lambda b, t: (t, b, 0)),  # y
                pl.BlockSpec((b_blk, H_pad), lambda b, t: (b, 0)),            # final h
            ],
            scratch_shapes=[
                pltpu.VMEM((b_blk, H_pad), f32),         # carried hidden state
                pltpu.VMEM((t_blk, b_blk, H_pad), f32),  # xw -> hiddens staging
            ]),
        compiler_params=pltpu.CompilerParams(
            dimension_semantics=("parallel", "arbitrary")),
    )(x_p, wx_p, bih_p, wh_p, who_p, bho_p, h0_p)

    y = y_p[:T, :B, :C]
    h_final = h_final_p[:B, :H]
    return y, h_final


def _reference_forward(x, pre_state, params, n_class):
    """Pure-JAX reference mirroring the PyTorch loop."""
    T, B, F = x.shape
    H = params["wh"].shape[0]
    h = jnp.zeros((B, H), jnp.float32) if pre_state is None else pre_state

    def step(h, x_t):
        a = x_t @ params["wx"] + h @ params["wh"] + params["b_ih"]
        hidden = jnp.tanh(a)
        o = hidden @ params["w_ho"] + params["b_ho"]
        p = jax.nn.sigmoid(o) if n_class == 1 else jax.nn.softmax(o, axis=-1)
        return hidden, p

    h_final, ys = jax.lax.scan(step, h, x)
    return ys, h_final


if __name__ == "__main__":
    # Small shapes consistent with the module's forward.
    T, B = 8, 2
    in_feature, hidden_size, n_class = 4, 32, 3

    key = jax.random.PRNGKey(0)
    k_x, k_wih, k_bih, k_who, k_bho = jax.random.split(key, 5)

    x = jax.random.normal(k_x, (T, B, in_feature), jnp.float32)

    # in2hidden: Linear(in_feature + hidden -> hidden), stored as (F+H, H) and
    # split into the x-part and the h-part (equivalent to concat @ W).
    fan_in = in_feature + hidden_size
    bound_ih = 1.0 / jnp.sqrt(jnp.float32(fan_in))
    w_ih = jax.random.uniform(k_wih, (fan_in, hidden_size), jnp.float32,
                              -bound_ih, bound_ih)
    b_ih = jax.random.uniform(k_bih, (hidden_size,), jnp.float32,
                              -bound_ih, bound_ih)

    bound_ho = 1.0 / jnp.sqrt(jnp.float32(hidden_size))
    w_ho = jax.random.uniform(k_who, (hidden_size, n_class), jnp.float32,
                              -bound_ho, bound_ho)
    b_ho = jax.random.uniform(k_bho, (n_class,), jnp.float32,
                              -bound_ho, bound_ho)

    params = {
        "wx": w_ih[:in_feature, :],
        "wh": w_ih[in_feature:, :],
        "b_ih": b_ih,
        "w_ho": w_ho,
        "b_ho": b_ho,
    }

    # Case 1: softmax head (n_class > 1), pre_state = None -> zeros.
    y, h_final = compute_rnn_forward(x, None, params, n_class)
    jax.block_until_ready((y, h_final))
    y_ref, h_ref = _reference_forward(x, None, params, n_class)
    assert jnp.allclose(y, y_ref, rtol=1e-5, atol=1e-5)
    assert jnp.allclose(h_final, h_ref, rtol=1e-5, atol=1e-5)

    # Case 2: sigmoid head (n_class == 1), T not a multiple of T_BLK (exercises
    # the in-kernel timestep masking) and an explicit pre_state.
    T2 = 5
    x2 = x[:T2]
    h0 = 0.1 * jax.random.normal(jax.random.PRNGKey(1), (B, hidden_size),
                                 jnp.float32)
    params1 = dict(params)
    params1["w_ho"] = w_ho[:, :1]
    params1["b_ho"] = b_ho[:1]
    y1, h1 = compute_rnn_forward(x2, h0, params1, 1)
    jax.block_until_ready((y1, h1))
    y1_ref, h1_ref = _reference_forward(x2, h0, params1, 1)
    assert jnp.allclose(y1, y1_ref, rtol=1e-5, atol=1e-5)
    assert jnp.allclose(h1, h1_ref, rtol=1e-5, atol=1e-5)

    print("KERNEL_OK")
</pallas_src>

<mosaic_0001>
module attributes {stable_mosaic.version = 11 : i64} {
  func.func @_rnn_kernel(%arg0: i32, %arg1: i32, %arg2: memref<8x8x4xf32, #tpu.memory_space<vmem>>, %arg3: memref<4x128xf32, #tpu.memory_space<vmem>>, %arg4: memref<1x128xf32, #tpu.memory_space<vmem>>, %arg5: memref<128x128xf32, #tpu.memory_space<vmem>>, %arg6: memref<128x128xf32, #tpu.memory_space<vmem>>, %arg7: memref<1x128xf32, #tpu.memory_space<vmem>>, %arg8: memref<8x128xf32, #tpu.memory_space<vmem>>, %arg9: memref<8x8x128xf32, #tpu.memory_space<vmem>>, %arg10: memref<8x128xf32, #tpu.memory_space<vmem>>, %arg11: memref<8x128xf32, #tpu.memory_space<vmem>>, %arg12: memref<8x8x128xf32, #tpu.memory_space<vmem>>) attributes {dimension_semantics = [#tpu.dimension_semantics<parallel>, #tpu.dimension_semantics<arbitrary>], iteration_bounds = array<i64: 1, 1>, scalar_prefetch = 0 : i64, scratch_operands = 2 : i64, tpu.core_type = #tpu.core_type<tc>, window_params = [{transform_indices = @transform_0, window_bounds = array<i64: 8, 8, 4>}, {pipeline_mode = #tpu.pipeline_mode<synchronous>, transform_indices = @transform_1, window_bounds = array<i64: 4, 128>}, {pipeline_mode = #tpu.pipeline_mode<synchronous>, transform_indices = @transform_2, window_bounds = array<i64: 1, 128>}, {pipeline_mode = #tpu.pipeline_mode<synchronous>, transform_indices = @transform_3, window_bounds = array<i64: 128, 128>}, {pipeline_mode = #tpu.pipeline_mode<synchronous>, transform_indices = @transform_4, window_bounds = array<i64: 128, 128>}, {pipeline_mode = #tpu.pipeline_mode<synchronous>, transform_indices = @transform_5, window_bounds = array<i64: 1, 128>}, {transform_indices = @transform_6, window_bounds = array<i64: 8, 128>}, {transform_indices = @transform_7, window_bounds = array<i64: 8, 8, 128>}, {transform_indices = @transform_8, window_bounds = array<i64: 8, 128>}]} {
    %c0_i32 = arith.constant 0 : i32
    %0 = arith.cmpi eq, %arg1, %c0_i32 : i32
    %1 = arith.extui %0 : i1 to i32
    %c0_i32_0 = arith.constant 0 : i32
    %2 = arith.cmpi ne, %1, %c0_i32_0 : i32
    scf.if %2 {
      %c0_118 = arith.constant 0 : index
      %c0_119 = arith.constant 0 : index
      %161 = vector.load %arg8[%c0_118, %c0_119] : memref<8x128xf32, #tpu.memory_space<vmem>>, vector<8x128xf32>
      %c0_120 = arith.constant 0 : index
      %c0_121 = arith.constant 0 : index
      %162 = vector.load %arg11[%c0_120, %c0_121] : memref<8x128xf32, #tpu.memory_space<vmem>>, vector<8x128xf32>
      tpu.vector_store %arg11[%c0_120, %c0_121], %161 {strides = array<i32>} : memref<8x128xf32, #tpu.memory_space<vmem>>, vector<8x128xf32>,
    } else {
    }
    %c0 = arith.constant 0 : index
    %c0_1 = arith.constant 0 : index
    %3 = vector.load %arg5[%c0, %c0_1] : memref<128x128xf32, #tpu.memory_space<vmem>>, vector<128x128xf32>
    %c0_2 = arith.constant 0 : index
    %c0_3 = arith.constant 0 : index
    %c0_4 = arith.constant 0 : index
    %4 = vector.load %arg2[%c0_2, %c0_3, %c0_4] : memref<8x8x4xf32, #tpu.memory_space<vmem>>, vector<8x8x4xf32>
    %5 = vector.shape_cast %4 : vector<8x8x4xf32> to vector<64x4xf32>
    %c0_5 = arith.constant 0 : index
    %c0_6 = arith.constant 0 : index
    %6 = vector.load %arg3[%c0_5, %c0_6] : memref<4x128xf32, #tpu.memory_space<vmem>>, vector<4x128xf32>
    %cst = arith.constant dense<0.000000e+00> : vector<64x128xf32>
    %7 = tpu.matmul %5, %6, %cst {dimension_numbers = #tpu.dot_dimension_numbers<[1], [0], [0], [1], [0, 0, 1, 1], [], []>} : vector<64x4xf32>, vector<4x128xf32>, vector<64x128xf32> -> vector<64x128xf32>
    %c0_7 = arith.constant 0 : index
    %c0_8 = arith.constant 0 : index
    %8 = vector.load %arg4[%c0_7, %c0_8] : memref<1x128xf32, #tpu.memory_space<vmem>>, vector<1x128xf32>
    %9 = vector.broadcast %8 : vector<1x128xf32> to vector<64x128xf32>
    %10 = arith.addf %7, %9 : vector<64x128xf32>
    %11 = vector.shape_cast %10 : vector<64x128xf32> to vector<8x8x128xf32>
    %c0_9 = arith.constant 0 : index
    %c0_10 = arith.constant 0 : index
    %c0_11 = arith.constant 0 : index
    %12 = vector.load %arg12[%c0_9, %c0_10, %c0_11] : memref<8x8x128xf32, #tpu.memory_space<vmem>>, vector<8x8x128xf32>
    tpu.vector_store %arg12[%c0_9, %c0_10, %c0_11], %11 {strides = array<i32>} : memref<8x8x128xf32, #tpu.memory_space<vmem>>, vector<8x8x128xf32>,
    %c0_i32_12 = arith.constant 0 : i32
    %c0_13 = arith.constant 0 : index
    %c0_14 = arith.constant 0 : index
    %13 = vector.load %arg11[%c0_13, %c0_14] : memref<8x128xf32, #tpu.memory_space<vmem>>, vector<8x128xf32>
    %14 = arith.index_cast %c0_i32_12 : i32 to index
    %c0_15 = arith.constant 0 : index
    %c0_16 = arith.constant 0 : index
    %15 = vector.load %arg12[%14, %c0_15, %c0_16] : memref<8x8x128xf32, #tpu.memory_space<vmem>>, vector<1x8x128xf32>
    %16 = vector.shape_cast %15 : vector<1x8x128xf32> to vector<8x128xf32>
    %cst_17 = arith.constant dense<0.000000e+00> : vector<8x128xf32>
    %17 = tpu.matmul %13, %3, %cst_17 {dimension_numbers = #tpu.dot_dimension_numbers<[1], [0], [0], [1], [0, 0, 1, 1], [], []>} : vector<8x128xf32>, vector<128x128xf32>, vector<8x128xf32> -> vector<8x128xf32>
    %18 = arith.addf %16, %17 : vector<8x128xf32>
    %19 = math.tanh %18 : vector<8x128xf32>
    %c8_i32 = arith.constant 8 : i32
    %20 = arith.muli %arg1, %c8_i32 : i32
    %21 = arith.addi %20, %c0_i32_12 : i32
    %c8_i32_18 = arith.constant 8 : i32
    %22 = arith.cmpi slt, %21, %c8_i32_18 : i32
    %23 = arith.select %22, %19, %13 : vector<8x128xf32>
    %c0_19 = arith.constant 0 : index
    %c0_20 = arith.constant 0 : index
    %24 = vector.load %arg11[%c0_19, %c0_20] : memref<8x128xf32, #tpu.memory_space<vmem>>, vector<8x128xf32>
    tpu.vector_store %arg11[%c0_19, %c0_20], %23 {strides = array<i32>} : memref<8x128xf32, #tpu.memory_space<vmem>>, vector<8x128xf32>,
    %25 = arith.index_cast %c0_i32_12 : i32 to index
    %c0_21 = arith.constant 0 : index
    %c0_22 = arith.constant 0 : index
    %26 = vector.load %arg12[%25, %c0_21, %c0_22] : memref<8x8x128xf32, #tpu.memory_space<vmem>>, vector<1x8x128xf32>
    %27 = vector.shape_cast %26 : vector<1x8x128xf32> to vector<8x128xf32>
    %28 = vector.shape_cast %23 : vector<8x128xf32> to vector<1x8x128xf32>
    tpu.vector_store %arg12[%25, %c0_21, %c0_22], %28 {strides = array<i32>} : memref<8x8x128xf32, #tpu.memory_space<vmem>>, vector<1x8x128xf32>,
    %c1_i32 = arith.constant 1 : i32
    %c0_23 = arith.constant 0 : index
    %c0_24 = arith.constant 0 : index
    %29 = vector.load %arg11[%c0_23, %c0_24] : memref<8x128xf32, #tpu.memory_space<vmem>>, vector<8x128xf32>
    %30 = arith.index_cast %c1_i32 : i32 to index
    %c0_25 = arith.constant 0 : index
    %c0_26 = arith.constant 0 : index
    %31 = vector.load %arg12[%30, %c0_25, %c0_26] : memref<8x8x128xf32, #tpu.memory_space<vmem>>, vector<1x8x128xf32>
    %32 = vector.shape_cast %31 : vector<1x8x128xf32> to vector<8x128xf32>
    %cst_27 = arith.constant dense<0.000000e+00> : vector<8x128xf32>
    %33 = tpu.matmul %29, %3, %cst_27 {dimension_numbers = #tpu.dot_dimension_numbers<[1], [0], [0], [1], [0, 0, 1, 1], [], []>} : vector<8x128xf32>, vector<128x128xf32>, vector<8x128xf32> -> vector<8x128xf32>
    %34 = arith.addf %32, %33 : vector<8x128xf32>
    %35 = math.tanh %34 : vector<8x128xf32>
    %c8_i32_28 = arith.constant 8 : i32
    %36 = arith.muli %arg1, %c8_i32_28 : i32
    %37 = arith.addi %36, %c1_i32 : i32
    %c8_i32_29 = arith.constant 8 : i32
    %38 = arith.cmpi slt, %37, %c8_i32_29 : i32
    %39 = arith.select %38, %35, %29 : vector<8x128xf32>
    %c0_30 = arith.constant 0 : index
    %c0_31 = arith.constant 0 : index
    %40 = vector.load %arg11[%c0_30, %c0_31] : memref<8x128xf32, #tpu.memory_space<vmem>>, vector<8x128xf32>
    tpu.vector_store %arg11[%c0_30, %c0_31], %39 {strides = array<i32>} : memref<8x128xf32, #tpu.memory_space<vmem>>, vector<8x128xf32>,
    %41 = arith.index_cast %c1_i32 : i32 to index
    %c0_32 = arith.constant 0 : index
    %c0_33 = arith.constant 0 : index
    %42 = vector.load %arg12[%41, %c0_32, %c0_33] : memref<8x8x128xf32, #tpu.memory_space<vmem>>, vector<1x8x128xf32>
    %43 = vector.shape_cast %42 : vector<1x8x128xf32> to vector<8x128xf32>
    %44 = vector.shape_cast %39 : vector<8x128xf32> to vector<1x8x128xf32>
    tpu.vector_store %arg12[%41, %c0_32, %c0_33], %44 {strides = array<i32>} : memref<8x8x128xf32, #tpu.memory_space<vmem>>, vector<1x8x128xf32>,
    %c2_i32 = arith.constant 2 : i32
    %c0_34 = arith.constant 0 : index
    %c0_35 = arith.constant 0 : index
    %45 = vector.load %arg11[%c0_34, %c0_35] : memref<8x128xf32, #tpu.memory_space<vmem>>, vector<8x128xf32>
    %46 = arith.index_cast %c2_i32 : i32 to index
    %c0_36 = arith.constant 0 : index
    %c0_37 = arith.constant 0 : index
    %47 = vector.load %arg12[%46, %c0_36, %c0_37] : memref<8x8x128xf32, #tpu.memory_space<vmem>>, vector<1x8x128xf32>
    %48 = vector.shape_cast %47 : vector<1x8x128xf32> to vector<8x128xf32>
    %cst_38 = arith.constant dense<0.000000e+00> : vector<8x128xf32>
    %49 = tpu.matmul %45, %3, %cst_38 {dimension_numbers = #tpu.dot_dimension_numbers<[1], [0], [0], [1], [0, 0, 1, 1], [], []>} : vector<8x128xf32>, vector<128x128xf32>, vector<8x128xf32> -> vector<8x128xf32>
    %50 = arith.addf %48, %49 : vector<8x128xf32>
    %51 = math.tanh %50 : vector<8x128xf32>
    %c8_i32_39 = arith.constant 8 : i32
    %52 = arith.muli %arg1, %c8_i32_39 : i32
    %53 = arith.addi %52, %c2_i32 : i32
    %c8_i32_40 = arith.constant 8 : i32
    %54 = arith.cmpi slt, %53, %c8_i32_40 : i32
    %55 = arith.select %54, %51, %45 : vector<8x128xf32>
    %c0_41 = arith.constant 0 : index
    %c0_42 = arith.constant 0 : index
    %56 = vector.load %arg11[%c0_41, %c0_42] : memref<8x128xf32, #tpu.memory_space<vmem>>, vector<8x128xf32>
    tpu.vector_store %arg11[%c0_41, %c0_42], %55 {strides = array<i32>} : memref<8x128xf32, #tpu.memory_space<vmem>>, vector<8x128xf32>,
    %57 = arith.index_cast %c2_i32 : i32 to index
    %c0_43 = arith.constant 0 : index
    %c0_44 = arith.constant 0 : index
    %58 = vector.load %arg12[%57, %c0_43, %c0_44] : memref<8x8x128xf32, #tpu.memory_space<vmem>>, vector<1x8x128xf32>
    %59 = vector.shape_cast %58 : vector<1x8x128xf32> to vector<8x128xf32>
    %60 = vector.shape_cast %55 : vector<8x128xf32> to vector<1x8x128xf32>
    tpu.vector_store %arg12[%57, %c0_43, %c0_44], %60 {strides = array<i32>} : memref<8x8x128xf32, #tpu.memory_space<vmem>>, vector<1x8x128xf32>,
    %c3_i32 = arith.constant 3 : i32
    %c0_45 = arith.constant 0 : index
    %c0_46 = arith.constant 0 : index
    %61 = vector.load %arg11[%c0_45, %c0_46] : memref<8x128xf32, #tpu.memory_space<vmem>>, vector<8x128xf32>
    %62 = arith.index_cast %c3_i32 : i32 to index
    %c0_47 = arith.constant 0 : index
    %c0_48 = arith.constant 0 : index
    %63 = vector.load %arg12[%62, %c0_47, %c0_48] : memref<8x8x128xf32, #tpu.memory_space<vmem>>, vector<1x8x128xf32>
    %64 = vector.shape_cast %63 : vector<1x8x128xf32> to vector<8x128xf32>
    %cst_49 = arith.constant dense<0.000000e+00> : vector<8x128xf32>
    %65 = tpu.matmul %61, %3, %cst_49 {dimension_numbers = #tpu.dot_dimension_numbers<[1], [0], [0], [1], [0, 0, 1, 1], [], []>} : vector<8x128xf32>, vector<128x128xf32>, vector<8x128xf32> -> vector<8x128xf32>
    %66 = arith.addf %64, %65 : vector<8x128xf32>
    %67 = math.tanh %66 : vector<8x128xf32>
    %c8_i32_50 = arith.constant 8 : i32
    %68 = arith.muli %arg1, %c8_i32_50 : i32
    %69 = arith.addi %68, %c3_i32 : i32
    %c8_i32_51 = arith.constant 8 : i32
    %70 = arith.cmpi slt, %69, %c8_i32_51 : i32
    %71 = arith.select %70, %67, %61 : vector<8x128xf32>
    %c0_52 = arith.constant 0 : index
    %c0_53 = arith.constant 0 : index
    %72 = vector.load %arg11[%c0_52, %c0_53] : memref<8x128xf32, #tpu.memory_space<vmem>>, vector<8x128xf32>
    tpu.vector_store %arg11[%c0_52, %c0_53], %71 {strides = array<i32>} : memref<8x128xf32, #tpu.memory_space<vmem>>, vector<8x128xf32>,
    %73 = arith.index_cast %c3_i32 : i32 to index
    %c0_54 = arith.constant 0 : index
    %c0_55 = arith.constant 0 : index
    %74 = vector.load %arg12[%73, %c0_54, %c0_55] : memref<8x8x128xf32, #tpu.memory_space<vmem>>, vector<1x8x128xf32>
    %75 = vector.shape_cast %74 : vector<1x8x128xf32> to vector<8x128xf32>
    %76 = vector.shape_cast %71 : vector<8x128xf32> to vector<1x8x128xf32>
    tpu.vector_store %arg12[%73, %c0_54, %c0_55], %76 {strides = array<i32>} : memref<8x8x128xf32, #tpu.memory_space<vmem>>, vector<1x8x128xf32>,
    %c4_i32 = arith.constant 4 : i32
    %c0_56 = arith.constant 0 : index
    %c0_57 = arith.constant 0 : index
    %77 = vector.load %arg11[%c0_56, %c0_57] : memref<8x128xf32, #tpu.memory_space<vmem>>, vector<8x128xf32>
    %78 = arith.index_cast %c4_i32 : i32 to index
    %c0_58 = arith.constant 0 : index
    %c0_59 = arith.constant 0 : index
    %79 = vector.load %arg12[%78, %c0_58, %c0_59] : memref<8x8x128xf32, #tpu.memory_space<vmem>>, vector<1x8x128xf32>
    %80 = vector.shape_cast %79 : vector<1x8x128xf32> to vector<8x128xf32>
    %cst_60 = arith.constant dense<0.000000e+00> : vector<8x128xf32>
    %81 = tpu.matmul %77, %3, %cst_60 {dimension_numbers = #tpu.dot_dimension_numbers<[1], [0], [0], [1], [0, 0, 1, 1], [], []>} : vector<8x128xf32>, vector<128x128xf32>, vector<8x128xf32> -> vector<8x128xf32>
    %82 = arith.addf %80, %81 : vector<8x128xf32>
    %83 = math.tanh %82 : vector<8x128xf32>
    %c8_i32_61 = arith.constant 8 : i32
    %84 = arith.muli %arg1, %c8_i32_61 : i32
    %85 = arith.addi %84, %c4_i32 : i32
    %c8_i32_62 = arith.constant 8 : i32
    %86 = arith.cmpi slt, %85, %c8_i32_62 : i32
    %87 = arith.select %86, %83, %77 : vector<8x128xf32>
    %c0_63 = arith.constant 0 : index
    %c0_64 = arith.constant 0 : index
    %88 = vector.load %arg11[%c0_63, %c0_64] : memref<8x128xf32, #tpu.memory_space<vmem>>, vector<8x128xf32>
    tpu.vector_store %arg11[%c0_63, %c0_64], %87 {strides = array<i32>} : memref<8x128xf32, #tpu.memory_space<vmem>>, vector<8x128xf32>,
    %89 = arith.index_cast %c4_i32 : i32 to index
    %c0_65 = arith.constant 0 : index
    %c0_66 = arith.constant 0 : index
    %90 = vector.load %arg12[%89, %c0_65, %c0_66] : memref<8x8x128xf32, #tpu.memory_space<vmem>>, vector<1x8x128xf32>
    %91 = vector.shape_cast %90 : vector<1x8x128xf32> to vector<8x128xf32>
    %92 = vector.shape_cast %87 : vector<8x128xf32> to vector<1x8x128xf32>
    tpu.vector_store %arg12[%89, %c0_65, %c0_66], %92 {strides = array<i32>} : memref<8x8x128xf32, #tpu.memory_space<vmem>>, vector<1x8x128xf32>,
    %c5_i32 = arith.constant 5 : i32
    %c0_67 = arith.constant 0 : index
    %c0_68 = arith.constant 0 : index
    %93 = vector.load %arg11[%c0_67, %c0_68] : memref<8x128xf32, #tpu.memory_space<vmem>>, vector<8x128xf32>
    %94 = arith.index_cast %c5_i32 : i32 to index
    %c0_69 = arith.constant 0 : index
    %c0_70 = arith.constant 0 : index
    %95 = vector.load %arg12[%94, %c0_69, %c0_70] : memref<8x8x128xf32, #tpu.memory_space<vmem>>, vector<1x8x128xf32>
    %96 = vector.shape_cast %95 : vector<1x8x128xf32> to vector<8x128xf32>
    %cst_71 = arith.constant dense<0.000000e+00> : vector<8x128xf32>
    %97 = tpu.matmul %93, %3, %cst_71 {dimension_numbers = #tpu.dot_dimension_numbers<[1], [0], [0], [1], [0, 0, 1, 1], [], []>} : vector<8x128xf32>, vector<128x128xf32>, vector<8x128xf32> -> vector<8x128xf32>
    %98 = arith.addf %96, %97 : vector<8x128xf32>
    %99 = math.tanh %98 : vector<8x128xf32>
    %c8_i32_72 = arith.constant 8 : i32
    %100 = arith.muli %arg1, %c8_i32_72 : i32
    %101 = arith.addi %100, %c5_i32 : i32
    %c8_i32_73 = arith.constant 8 : i32
    %102 = arith.cmpi slt, %101, %c8_i32_73 : i32
    %103 = arith.select %102, %99, %93 : vector<8x128xf32>
    %c0_74 = arith.constant 0 : index
    %c0_75 = arith.constant 0 : index
    %104 = vector.load %arg11[%c0_74, %c0_75] : memref<8x128xf32, #tpu.memory_space<vmem>>, vector<8x128xf32>
    tpu.vector_store %arg11[%c0_74, %c0_75], %103 {strides = array<i32>} : memref<8x128xf32, #tpu.memory_space<vmem>>, vector<8x128xf32>,
    %105 = arith.index_cast %c5_i32 : i32 to index
    %c0_76 = arith.constant 0 : index
    %c0_77 = arith.constant 0 : index
    %106 = vector.load %arg12[%105, %c0_76, %c0_77] : memref<8x8x128xf32, #tpu.memory_space<vmem>>, vector<1x8x128xf32>
    %107 = vector.shape_cast %106 : vector<1x8x128xf32> to vector<8x128xf32>
    %108 = vector.shape_cast %103 : vector<8x128xf32> to vector<1x8x128xf32>
    tpu.vector_store %arg12[%105, %c0_76, %c0_77], %108 {strides = array<i32>} : memref<8x8x128xf32, #tpu.memory_space<vmem>>, vector<1x8x128xf32>,
    %c6_i32 = arith.constant 6 : i32
    %c0_78 = arith.constant 0 : index
    %c0_79 = arith.constant 0 : index
    %109 = vector.load %arg11[%c0_78, %c0_79] : memref<8x128xf32, #tpu.memory_space<vmem>>, vector<8x128xf32>
    %110 = arith.index_cast %c6_i32 : i32 to index
    %c0_80 = arith.constant 0 : index
    %c0_81 = arith.constant 0 : index
    %111 = vector.load %arg12[%110, %c0_80, %c0_81] : memref<8x8x128xf32, #tpu.memory_space<vmem>>, vector<1x8x128xf32>
    %112 = vector.shape_cast %111 : vector<1x8x128xf32> to vector<8x128xf32>
    %cst_82 = arith.constant dense<0.000000e+00> : vector<8x128xf32>
    %113 = tpu.matmul %109, %3, %cst_82 {dimension_numbers = #tpu.dot_dimension_numbers<[1], [0], [0], [1], [0, 0, 1, 1], [], []>} : vector<8x128xf32>, vector<128x128xf32>, vector<8x128xf32> -> vector<8x128xf32>
    %114 = arith.addf %112, %113 : vector<8x128xf32>
    %115 = math.tanh %114 : vector<8x128xf32>
    %c8_i32_83 = arith.constant 8 : i32
    %116 = arith.muli %arg1, %c8_i32_83 : i32
    %117 = arith.addi %116, %c6_i32 : i32
    %c8_i32_84 = arith.constant 8 : i32
    %118 = arith.cmpi slt, %117, %c8_i32_84 : i32
    %119 = arith.select %118, %115, %109 : vector<8x128xf32>
    %c0_85 = arith.constant 0 : index
    %c0_86 = arith.constant 0 : index
    %120 = vector.load %arg11[%c0_85, %c0_86] : memref<8x128xf32, #tpu.memory_space<vmem>>, vector<8x128xf32>
    tpu.vector_store %arg11[%c0_85, %c0_86], %119 {strides = array<i32>} : memref<8x128xf32, #tpu.memory_space<vmem>>, vector<8x128xf32>,
    %121 = arith.index_cast %c6_i32 : i32 to index
    %c0_87 = arith.constant 0 : index
    %c0_88 = arith.constant 0 : index
    %122 = vector.load %arg12[%121, %c0_87, %c0_88] : memref<8x8x128xf32, #tpu.memory_space<vmem>>, vector<1x8x128xf32>
    %123 = vector.shape_cast %122 : vector<1x8x128xf32> to vector<8x128xf32>
    %124 = vector.shape_cast %119 : vector<8x128xf32> to vector<1x8x128xf32>
    tpu.vector_store %arg12[%121, %c0_87, %c0_88], %124 {strides = array<i32>} : memref<8x8x128xf32, #tpu.memory_space<vmem>>, vector<1x8x128xf32>,
    %c7_i32 = arith.constant 7 : i32
    %c0_89 = arith.constant 0 : index
    %c0_90 = arith.constant 0 : index
    %125 = vector.load %arg11[%c0_89, %c0_90] : memref<8x128xf32, #tpu.memory_space<vmem>>, vector<8x128xf32>
    %126 = arith.index_cast %c7_i32 : i32 to index
    %c0_91 = arith.constant 0 : index
    %c0_92 = arith.constant 0 : index
    %127 = vector.load %arg12[%126, %c0_91, %c0_92] : memref<8x8x128xf32, #tpu.memory_space<vmem>>, vector<1x8x128xf32>
    %128 = vector.shape_cast %127 : vector<1x8x128xf32> to vector<8x128xf32>
    %cst_93 = arith.constant dense<0.000000e+00> : vector<8x128xf32>
    %129 = tpu.matmul %125, %3, %cst_93 {dimension_numbers = #tpu.dot_dimension_numbers<[1], [0], [0], [1], [0, 0, 1, 1], [], []>} : vector<8x128xf32>, vector<128x128xf32>, vector<8x128xf32> -> vector<8x128xf32>
    %130 = arith.addf %128, %129 : vector<8x128xf32>
    %131 = math.tanh %130 : vector<8x128xf32>
    %c8_i32_94 = arith.constant 8 : i32
    %132 = arith.muli %arg1, %c8_i32_94 : i32
    %133 = arith.addi %132, %c7_i32 : i32
    %c8_i32_95 = arith.constant 8 : i32
    %134 = arith.cmpi slt, %133, %c8_i32_95 : i32
    %135 = arith.select %134, %131, %125 : vector<8x128xf32>
    %c0_96 = arith.constant 0 : index
    %c0_97 = arith.constant 0 : index
    %136 = vector.load %arg11[%c0_96, %c0_97] : memref<8x128xf32, #tpu.memory_space<vmem>>, vector<8x128xf32>
    tpu.vector_store %arg11[%c0_96, %c0_97], %135 {strides = array<i32>} : memref<8x128xf32, #tpu.memory_space<vmem>>, vector<8x128xf32>,
    %137 = arith.index_cast %c7_i32 : i32 to index
    %c0_98 = arith.constant 0 : index
    %c0_99 = arith.constant 0 : index
    %138 = vector.load %arg12[%137, %c0_98, %c0_99] : memref<8x8x128xf32, #tpu.memory_space<vmem>>, vector<1x8x128xf32>
    %139 = vector.shape_cast %138 : vector<1x8x128xf32> to vector<8x128xf32>
    %140 = vector.shape_cast %135 : vector<8x128xf32> to vector<1x8x128xf32>
    tpu.vector_store %arg12[%137, %c0_98, %c0_99], %140 {strides = array<i32>} : memref<8x8x128xf32, #tpu.memory_space<vmem>>, vector<1x8x128xf32>,
    %c8_i32_100 = arith.constant 8 : i32
    %c0_101 = arith.constant 0 : index
    %c0_102 = arith.constant 0 : index
    %c0_103 = arith.constant 0 : index
    %141 = vector.load %arg12[%c0_101, %c0_102, %c0_103] : memref<8x8x128xf32, #tpu.memory_space<vmem>>, vector<8x8x128xf32>
    %142 = vector.shape_cast %141 : vector<8x8x128xf32> to vector<64x128xf32>
    %c0_104 = arith.constant 0 : index
    %c0_105 = arith.constant 0 : index
    %143 = vector.load %arg6[%c0_104, %c0_105] : memref<128x128xf32, #tpu.memory_space<vmem>>, vector<128x128xf32>
    %cst_106 = arith.constant dense<0.000000e+00> : vector<64x128xf32>
    %144 = tpu.matmul %142, %143, %cst_106 {dimension_numbers = #tpu.dot_dimension_numbers<[1], [0], [0], [1], [0, 0, 1, 1], [], []>} : vector<64x128xf32>, vector<128x128xf32>, vector<64x128xf32> -> vector<64x128xf32>
    %c0_107 = arith.constant 0 : index
    %c0_108 = arith.constant 0 : index
    %145 = vector.load %arg7[%c0_107, %c0_108] : memref<1x128xf32, #tpu.memory_space<vmem>>, vector<1x128xf32>
    %146 = vector.broadcast %145 : vector<1x128xf32> to vector<64x128xf32>
    %147 = arith.addf %144, %146 : vector<64x128xf32>
    %cst_109 = arith.constant dense<0xFF800000> : vector<64xf32>
    %148 = vector.multi_reduction <maximumf>, %147, %cst_109 [1] : vector<64x128xf32> to vector<64xf32>
    %149 = vector.shape_cast %148 : vector<64xf32> to vector<64x1xf32>
    %150 = vector.broadcast %149 : vector<64x1xf32> to vector<64x128xf32>
    %151 = arith.subf %147, %150 : vector<64x128xf32>
    %152 = math.exp %151 : vector<64x128xf32>
    %cst_110 = arith.constant dense<0.000000e+00> : vector<64xf32>
    %153 = vector.multi_reduction <add>, %152, %cst_110 [1] : vector<64x128xf32> to vector<64xf32>
    %154 = vector.shape_cast %153 : vector<64xf32> to vector<64x1xf32>
    %155 = vector.broadcast %154 : vector<64x1xf32> to vector<64x128xf32>
    %156 = arith.divf %152, %155 : vector<64x128xf32>
    %157 = vector.shape_cast %156 : vector<64x128xf32> to vector<8x8x128xf32>
    %c0_111 = arith.constant 0 : index
    %c0_112 = arith.constant 0 : index
    %c0_113 = arith.constant 0 : index
    %158 = vector.load %arg9[%c0_111, %c0_112, %c0_113] : memref<8x8x128xf32, #tpu.memory_space<vmem>>, vector<8x8x128xf32>
    tpu.vector_store %arg9[%c0_111, %c0_112, %c0_113], %157 {strides = array<i32>} : memref<8x8x128xf32, #tpu.memory_space<vmem>>, vector<8x8x128xf32>,
    %c0_114 = arith.constant 0 : index
    %c0_115 = arith.constant 0 : index
    %159 = vector.load %arg11[%c0_114, %c0_115] : memref<8x128xf32, #tpu.memory_space<vmem>>, vector<8x128xf32>
    %c0_116 = arith.constant 0 : index
    %c0_117 = arith.constant 0 : index
    %160 = vector.load %arg10[%c0_116, %c0_117] : memref<8x128xf32, #tpu.memory_space<vmem>>, vector<8x128xf32>
    tpu.vector_store %arg10[%c0_116, %c0_117], %159 {strides = array<i32>} : memref<8x128xf32, #tpu.memory_space<vmem>>, vector<8x128xf32>,
    return
  }
  func.func @transform_0(%arg0: i32, %arg1: i32) -> (i32, i32, i32) {
    %c0_i32 = arith.constant 0 : i32
    %c0_i32_0 = arith.constant 0 : i32
    return %arg1, %arg0, %c0_i32 : i32, i32, i32
  }
  func.func @transform_1(%arg0: i32, %arg1: i32) -> (i32, i32) {
    %c0_i32 = arith.constant 0 : i32
    %c0_i32_0 = arith.constant 0 : i32
    %c0_i32_1 = arith.constant 0 : i32
    return %c0_i32, %c0_i32_0 : i32, i32
  }
  func.func @transform_2(%arg0: i32, %arg1: i32) -> (i32, i32) {
    %c0_i32 = arith.constant 0 : i32
    %c0_i32_0 = arith.constant 0 : i32
    %c0_i32_1 = arith.constant 0 : i32
    return %c0_i32, %c0_i32_0 : i32, i32
  }
  func.func @transform_3(%arg0: i32, %arg1: i32) -> (i32, i32) {
    %c0_i32 = arith.constant 0 : i32
    %c0_i32_0 = arith.constant 0 : i32
    %c0_i32_1 = arith.constant 0 : i32
    return %c0_i32, %c0_i32_0 : i32, i32
  }
  func.func @transform_4(%arg0: i32, %arg1: i32) -> (i32, i32) {
    %c0_i32 = arith.constant 0 : i32
    %c0_i32_0 = arith.constant 0 : i32
    %c0_i32_1 = arith.constant 0 : i32
    return %c0_i32, %c0_i32_0 : i32, i32
  }
  func.func @transform_5(%arg0: i32, %arg1: i32) -> (i32, i32) {
    %c0_i32 = arith.constant 0 : i32
    %c0_i32_0 = arith.constant 0 : i32
    %c0_i32_1 = arith.constant 0 : i32
    return %c0_i32, %c0_i32_0 : i32, i32
  }
  func.func @transform_6(%arg0: i32, %arg1: i32) -> (i32, i32) {
    %c0_i32 = arith.constant 0 : i32
    %c0_i32_0 = arith.constant 0 : i32
    return %arg0, %c0_i32 : i32, i32
  }
  func.func @transform_7(%arg0: i32, %arg1: i32) -> (i32, i32, i32) {
    %c0_i32 = arith.constant 0 : i32
    %c0_i32_0 = arith.constant 0 : i32
    return %arg1, %arg0, %c0_i32 : i32, i32, i32
  }
  func.func @transform_8(%arg0: i32, %arg1: i32) -> (i32, i32) {
    %c0_i32 = arith.constant 0 : i32
    %c0_i32_0 = arith.constant 0 : i32
    return %arg0, %c0_i32 : i32, i32
  }
}

</mosaic_0001>

<llo_original>
// kernel: tpu_custom_call.1
$region0: #{tpu_custom_call.1}
  #allocation0 [shape = 'u32[]', space=smem, size = 0x4, offset = 0x4, fixed_abs, tag = 'smem constant byte address 0x4 - core index']
  #allocation1 [shape = 'u32[144,128]{1,0:T(1,128)}', space=vmem, size = 0x12000, scoped, tag = 'internal scratch']
  #allocation2 [shape = 'f32[8,128]{1,0:T(8,128)}', space=vmem, size = 0x1000, scoped, tag = 'scratch operand']
  #allocation3 [shape = 'f32[8,8,128]{2,1,0:T(8,128)}', space=vmem, size = 0x8000, scoped, tag = 'scratch operand']
  %s0 = inlined_call_operand.vmem [shape: f32[8,8,4], index: 0, kind: input, shape index: {}]
  %s1 = inlined_call_operand.vmem [shape: f32[4,128], index: 1, kind: input, shape index: {}]
  %s2 = inlined_call_operand.vmem [shape: f32[1,128], index: 2, kind: input, shape index: {}]
  %s3 = inlined_call_operand.hbm [shape: f32[128,128], index: 3, kind: input, shape index: {}]
  %s4 = inlined_call_operand.hbm [shape: f32[128,128], index: 4, kind: input, shape index: {}]
  %s5 = inlined_call_operand.vmem [shape: f32[1,128], index: 5, kind: input, shape index: {}]
  %s6 = inlined_call_operand.vmem [shape: f32[8,128], index: 6, kind: input, shape index: {}]
  %s7 = inlined_call_operand.hbm [shape: f32[8,8,128], index: 7, kind: output, shape index: {0}]
  %s8 = inlined_call_operand.hbm [shape: f32[8,128], index: 8, kind: output, shape index: {1}]
  %9 = xla_tuple %s7, %s8
  %s10 = sld [smem:[#allocation0]]
  $region58: #{tpu_custom_call.1} parent=0
    _
  %s12 = ssub.s32 1, %s10
  %s13 = scalar_select 0, %s12, %s10
  $region1: #{tpu_custom_call.1} parent=0
    #allocation4 [shape = 'u8[65536]{0}', space=vmem, size = 0x10000, scoped, tag = 'input window, operand 3, single buffered']
    #allocation5 [shape = 's32[1]{0}', space=sflag, size = 0x4, scoped, tag = 'scoped memory for tpu_custom_call.1']
    #allocation6 [shape = 's32[1]{0}', space=sflag, size = 0x4, scoped, tag = 'scoped memory for tpu_custom_call.1']
    #allocation7 [shape = 'u8[65536]{0}', space=vmem, size = 0x10000, scoped, tag = 'input window, operand 4, single buffered']
    #allocation8 [shape = 's32[1]{0}', space=sflag, size = 0x4, scoped, tag = 'scoped memory for tpu_custom_call.1']
    #allocation9 [shape = 'u8[32768]{0}', space=vmem, size = 0x8000, scoped, tag = 'output window, operand 0, single buffered']
    #allocation10 [shape = 'u8[4096]{0}', space=vmem, size = 0x1000, scoped, tag = 'output window, operand 1, single buffered']
    #allocation11 [shape = 's32[1]{0}', space=sflag, size = 0x4, scoped, tag = 'scoped memory for tpu_custom_call.1']
    %14 = vsyncpa [#allocation5], 0
    %15 = vsyncpa [#allocation8], 0
    %16 = vsyncpa [#allocation6], 0
    %17 = vsyncpa [#allocation11], 0
    // Predicated region
    $region2: #{tpu_custom_call.1} parent=1 // pred_check
      _
    $region3: #{tpu_custom_call.1} parent=1 // pred_check_branch
      %19 = sbr.rel (0) target = $region5
    $region4: #{tpu_custom_call.1} parent=1 // pred_region
      _
    $region5: #{tpu_custom_call.1} parent=1 // pred_fallthru
      _
    // Predicated region
    $region6: #{tpu_custom_call.1} parent=1 // pred_check
      _
    $region7: #{tpu_custom_call.1} parent=1 // pred_check_branch
      %21 = sbr.rel (0) target = $region9
    $region8: #{tpu_custom_call.1} parent=1 // pred_region
      _
    $region9: #{tpu_custom_call.1} parent=1 // pred_fallthru
      _
    // Predicated region
    $region10: #{tpu_custom_call.1} parent=1 // pred_check
      _
    $region11: #{tpu_custom_call.1} parent=1 // pred_check_branch
      %23 = sbr.rel (0) target = $region13
    $region12: #{tpu_custom_call.1} parent=1 // pred_region
      _
    $region13: #{tpu_custom_call.1} parent=1 // pred_fallthru
      _
    // Predicated region
    $region14: #{tpu_custom_call.1} parent=1 // pred_check
      _
    $region15: #{tpu_custom_call.1} parent=1 // pred_check_branch
      %25 = sbr.rel (0) target = $region17
    $region16: #{tpu_custom_call.1} parent=1 // pred_region
      %s27 = ssub.s32 2048, 2048
      %28 = vsyncadd [#allocation5], %s27
      %s29 = sshll.u32 [#allocation4], 4
      %s30 = int_to_ptr.vmem [resolvable:$true] %s29
      %35 = dma.hbm_to_vmem [thread:$0]  %s3, 2048, %s30, [#allocation5], 128, 128, 8
    $region17: #{tpu_custom_call.1} parent=1 // pred_fallthru
      _
    // Predicated region
    $region18: #{tpu_custom_call.1} parent=1 // pred_check
      _
    $region19: #{tpu_custom_call.1} parent=1 // pred_check_branch
      %37 = sbr.rel (0) target = $region21
    $region20: #{tpu_custom_call.1} parent=1 // pred_region
      %s39 = ssub.s32 2048, 2048
      %40 = vsyncadd [#allocation8], %s39
      %s41 = sshll.u32 [#allocation7], 4
      %s42 = int_to_ptr.vmem [resolvable:$true] %s41
      %47 = dma.hbm_to_vmem [thread:$0]  %s4, 2048, %s42, [#allocation8], 128, 128, 8
    $region21: #{tpu_custom_call.1} parent=1 // pred_fallthru
      _
    // Predicated region
    $region22: #{tpu_custom_call.1} parent=1 // pred_check
      _
    $region23: #{tpu_custom_call.1} parent=1 // pred_check_branch
      %49 = sbr.rel (0) target = $region25
    $region24: #{tpu_custom_call.1} parent=1 // pred_region
      _
    $region25: #{tpu_custom_call.1} parent=1 // pred_fallthru
      _
    // Predicated region
    $region26: #{tpu_custom_call.1} parent=1 // pred_check
      _
    $region27: #{tpu_custom_call.1} parent=1 // pred_check_branch
      %51 = sbr.rel (0) target = $region29
    $region28: #{tpu_custom_call.1} parent=1 // pred_region
      _
    $region29: #{tpu_custom_call.1} parent=1 // pred_fallthru
      _
    // Predicated region
    $region30: #{tpu_custom_call.1} parent=1 // pred_check
      _
    $region31: #{tpu_custom_call.1} parent=1 // pred_check_branch
      %53 = sbr.rel (0) target = $region33
    $region32: #{tpu_custom_call.1} parent=1 // pred_region
      %54 = dma.done [#allocation5], 2048
    $region33: #{tpu_custom_call.1} parent=1 // pred_fallthru
      _
    // Predicated region
    $region34: #{tpu_custom_call.1} parent=1 // pred_check
      _
    $region35: #{tpu_custom_call.1} parent=1 // pred_check_branch
      %56 = sbr.rel (0) target = $region37
    $region36: #{tpu_custom_call.1} parent=1 // pred_region
      %57 = dma.done [#allocation8], 2048
    $region37: #{tpu_custom_call.1} parent=1 // pred_fallthru
      _
    %p58 = scmp.eq.s32.totalorder 0, 0
    // Predicated region
    $region38: #{tpu_custom_call.1} parent=1 // pred_check
      %p59 = pneg %p58
    $region39: #{tpu_custom_call.1} parent=1 // pred_check_branch
      %61 = sbr.rel (%p59) target = $region41
    $region40: #{tpu_custom_call.1} parent=1 // pred_region
      %v62 = vld [vmem:[%s6] sm:$0xff]
      %63 = vst [vmem:[#allocation2] sm:$0xff] %v62
    $region41: #{tpu_custom_call.1} parent=1 // pred_fallthru
      _
    %v64 = vld [vmem:[#allocation4] sm:$0xff]
    %v65 = vld [vmem:[#allocation4 + $0x8] sm:$0xff]
    %v66 = vld [vmem:[#allocation4 + $0x10] sm:$0xff]
    %v67 = vld [vmem:[#allocation4 + $0x18] sm:$0xff]
    %v68 = vld [vmem:[#allocation4 + $0x20] sm:$0xff]
    %v69 = vld [vmem:[#allocation4 + $0x28] sm:$0xff]
    %v70 = vld [vmem:[#allocation4 + $0x30] sm:$0xff]
    %v71 = vld [vmem:[#allocation4 + $0x38] sm:$0xff]
    %v72 = vld [vmem:[#allocation4 + $0x40] sm:$0xff]
    %v73 = vld [vmem:[#allocation4 + $0x48] sm:$0xff]
    %v74 = vld [vmem:[#allocation4 + $0x50] sm:$0xff]
    %v75 = vld [vmem:[#allocation4 + $0x58] sm:$0xff]
    %v76 = vld [vmem:[#allocation4 + $0x60] sm:$0xff]
    %v77 = vld [vmem:[#allocation4 + $0x68] sm:$0xff]
    %v78 = vld [vmem:[#allocation4 + $0x70] sm:$0xff]
    %v79 = vld [vmem:[#allocation4 + $0x78] sm:$0xff]
    %v80 = vld [vmem:[%s0] sm:$0xff]
    %v81 = vld [vmem:[%s0 + $0x8] sm:$0xff]
    %v82 = vld [vmem:[%s0 + $0x10] sm:$0xff]
    %v83 = vld [vmem:[%s0 + $0x18] sm:$0xff]
    %v84 = vld [vmem:[%s0 + $0x20] sm:$0xff]
    %v85 = vld [vmem:[%s0 + $0x28] sm:$0xff]
    %v86 = vld [vmem:[%s0 + $0x30] sm:$0xff]
    %v87 = vld [vmem:[%s0 + $0x38] sm:$0xff]
    %v88 = vld [vmem:[%s1] sm:$0xf]
    %v89 = vld [vmem:[%s2] sm:$0x1]
    %v91 = vlaneseq
    %v92 = vshrl.u32 %v91, 7
    %v93 = vsub.s32 0, %v92
    %v94 = vrot.slane %v89, %v93
    %vm96 = vcmask 31744
    %v98 = vsel %vm96, %v80, 0
    %v101 = vsel %vm96, %v81, 0
    %v104 = vsel %vm96, %v82, 0
    %v107 = vsel %vm96, %v83, 0
    %v110 = vsel %vm96, %v84, 0
    %v113 = vsel %vm96, %v85, 0
    %v116 = vsel %vm96, %v86, 0
    %v119 = vsel %vm96, %v87, 0
    %vm121 = vcmask 1043456
    %v123 = vsel %vm121, %v88, 0
    %125 = vmatprep.subr.mxu0 0.0
    %126 = vmatpush1.msra.mxu0 %v123
    %127 = vmatprep.subr.mxu0 0.0
    %128 = vmatpush1.msra.mxu0 0.0
    %129 = vmatprep.subr.mxu0 0.0
    %130 = vmatpush1.msra.mxu0 0.0
    %131 = vmatprep.subr.mxu0 0.0
    %132 = vmatpush1.msra.mxu0 0.0
    %133 = vmatprep.subr.mxu0 0.0
    %134 = vmatpush1.msra.mxu0 0.0
    %135 = vmatprep.subr.mxu0 0.0
    %136 = vmatpush1.msra.mxu0 0.0
    %137 = vmatprep.subr.mxu0 0.0
    %138 = vmatpush1.msra.mxu0 0.0
    %139 = vmatprep.subr.mxu0 0.0
    %140 = vmatpush1.msra.mxu0 0.0
    %141 = vmatprep.subr.mxu0 0.0
    %142 = vmatpush1.msra.mxu0 0.0
    %143 = vmatprep.subr.mxu0 0.0
    %144 = vmatpush1.msra.mxu0 0.0
    %145 = vmatprep.subr.mxu0 0.0
    %146 = vmatpush1.msra.mxu0 0.0
    %147 = vmatprep.subr.mxu0 0.0
    %148 = vmatpush1.msra.mxu0 0.0
    %149 = vmatprep.subr.mxu0 0.0
    %150 = vmatpush1.msra.mxu0 0.0
    %151 = vmatprep.subr.mxu0 0.0
    %152 = vmatpush1.msra.mxu0 0.0
    %153 = vmatprep.subr.mxu0 0.0
    %154 = vmatpush1.msra.mxu0 0.0
    %155 = vmatprep.subr.mxu0 0.0
    %156 = vmatpush1.msra.mxu0 0.0
    %157 = vmatprep.subr.mxu0 0.0
    %158 = vmatpush1.msra.mxu0 0.0
    %159 = vmatprep.subr.mxu0 0.0
    %160 = vmatpush1.msra.mxu0 0.0
    %161 = vmatprep.subr.mxu0 0.0
    %162 = vmatpush1.msra.mxu0 0.0
    %163 = vmatprep.subr.mxu0 0.0
    %164 = vmatpush1.msra.mxu0 0.0
    %165 = vmatprep.subr.mxu0 0.0
    %166 = vmatpush1.msra.mxu0 0.0
    %167 = vmatprep.subr.mxu0 0.0
    %168 = vmatpush1.msra.mxu0 0.0
    %169 = vmatprep.subr.mxu0 0.0
    %170 = vmatpush1.msra.mxu0 0.0
    %171 = vmatprep.subr.mxu0 0.0
    %172 = vmatpush1.msra.mxu0 0.0
    %173 = vmatprep.subr.mxu0 0.0
    %174 = vmatpush1.msra.mxu0 0.0
    %175 = vmatprep.subr.mxu0 0.0
    %176 = vmatpush1.msra.mxu0 0.0
    %177 = vmatprep.subr.mxu0 0.0
    %178 = vmatpush1.msra.mxu0 0.0
    %179 = vmatprep.subr.mxu0 0.0
    %180 = vmatpush1.msra.mxu0 0.0
    %181 = vmatprep.subr.mxu0 0.0
    %182 = vmatpush1.msra.mxu0 0.0
    %183 = vmatprep.subr.mxu0 0.0
    %184 = vmatpush1.msra.mxu0 0.0
    %185 = vmatprep.subr.mxu0 0.0
    %186 = vmatpush1.msra.mxu0 0.0
    %187 = vmatprep.subr.mxu0 0.0
    %188 = vmatpush1.msra.mxu0 0.0
    %189 = vmatprep.mubr.f32.mxu0 0.0
    %190 = vmatmul.mubr.f32.gmra.mrb[0].mxu0 %v98
    %v191 = vpop.f32.mrb[0].mxu0
    %v192 = vadd.f32 %v94, %v191
    %v193 = vpop.f32.mrb[0].mxu0
    %194 = vmatprep.mubr.f32.mxu0 0.0
    %195 = vmatmul.mubr.f32.gmra.mrb[0].mxu0 %v101
    %v196 = vpop.f32.mrb[0].mxu0
    %v197 = vadd.f32 %v94, %v196
    %v198 = vpop.f32.mrb[0].mxu0
    %199 = vmatprep.mubr.f32.mxu0 0.0
    %200 = vmatmul.mubr.f32.gmra.mrb[0].mxu0 %v104
    %v201 = vpop.f32.mrb[0].mxu0
    %v202 = vadd.f32 %v94, %v201
    %v203 = vpop.f32.mrb[0].mxu0
    %204 = vmatprep.mubr.f32.mxu0 0.0
    %205 = vmatmul.mubr.f32.gmra.mrb[0].mxu0 %v107
    %v206 = vpop.f32.mrb[0].mxu0
    %v207 = vadd.f32 %v94, %v206
    %v208 = vpop.f32.mrb[0].mxu0
    %209 = vmatprep.mubr.f32.mxu0 0.0
    %210 = vmatmul.mubr.f32.gmra.mrb[0].mxu0 %v110
    %v211 = vpop.f32.mrb[0].mxu0
    %v212 = vadd.f32 %v94, %v211
    %v213 = vpop.f32.mrb[0].mxu0
    %214 = vmatprep.mubr.f32.mxu0 0.0
    %215 = vmatmul.mubr.f32.gmra.mrb[0].mxu0 %v113
    %v216 = vpop.f32.mrb[0].mxu0
    %v217 = vadd.f32 %v94, %v216
    %v218 = vpop.f32.mrb[0].mxu0
    %219 = vmatprep.mubr.f32.mxu0 0.0
    %220 = vmatmul.mubr.f32.gmra.mrb[0].mxu0 %v116
    %v221 = vpop.f32.mrb[0].mxu0
    %v222 = vadd.f32 %v94, %v221
    %v223 = vpop.f32.mrb[0].mxu0
    %224 = vmatprep.mubr.f32.mxu0 0.0
    %225 = vmatmul.mubr.f32.gmra.mrb[0].mxu0 %v119
    %v226 = vpop.f32.mrb[0].mxu0
    %v227 = vadd.f32 %v94, %v226
    %v228 = vpop.f32.mrb[0].mxu0
    %229 = vdwg.mxu0
    %230 = vst [vmem:[#allocation3] sm:$0xff] %v192
    %231 = vst [vmem:[#allocation3 + $0x8] sm:$0xff] %v197
    %232 = vst [vmem:[#allocation3 + $0x10] sm:$0xff] %v202
    %233 = vst [vmem:[#allocation3 + $0x18] sm:$0xff] %v207
    %234 = vst [vmem:[#allocation3 + $0x20] sm:$0xff] %v212
    %235 = vst [vmem:[#allocation3 + $0x28] sm:$0xff] %v217
    %236 = vst [vmem:[#allocation3 + $0x30] sm:$0xff] %v222
    %237 = vst [vmem:[#allocation3 + $0x38] sm:$0xff] %v227
    %v238 = vld [vmem:[#allocation2] sm:$0xff]
    %v239 = vld [vmem:[#allocation3] sm:$0xff]
    %240 = vmatprep.subr.mxu0 0.0
    %241 = vmatpush1.msra.mxu0 %v64
    %242 = vmatprep.subr.mxu0 0.0
    %243 = vmatpush1.msra.mxu0 %v65
    %244 = vmatprep.subr.mxu0 0.0
    %245 = vmatpush1.msra.mxu0 %v66
    %246 = vmatprep.subr.mxu0 0.0
    %247 = vmatpush1.msra.mxu0 %v67
    %248 = vmatprep.subr.mxu0 0.0
    %249 = vmatpush1.msra.mxu0 %v68
    %250 = vmatprep.subr.mxu0 0.0
    %251 = vmatpush1.msra.mxu0 %v69
    %252 = vmatprep.subr.mxu0 0.0
    %253 = vmatpush1.msra.mxu0 %v70
    %254 = vmatprep.subr.mxu0 0.0
    %255 = vmatpush1.msra.mxu0 %v71
    %256 = vmatprep.subr.mxu0 0.0
    %257 = vmatpush1.msra.mxu0 %v72
    %258 = vmatprep.subr.mxu0 0.0
    %259 = vmatpush1.msra.mxu0 %v73
    %260 = vmatprep.subr.mxu0 0.0
    %261 = vmatpush1.msra.mxu0 %v74
    %262 = vmatprep.subr.mxu0 0.0
    %263 = vmatpush1.msra.mxu0 %v75
    %264 = vmatprep.subr.mxu0 0.0
    %265 = vmatpush1.msra.mxu0 %v76
    %266 = vmatprep.subr.mxu0 0.0
    %267 = vmatpush1.msra.mxu0 %v77
    %268 = vmatprep.subr.mxu0 0.0
    %269 = vmatpush1.msra.mxu0 %v78
    %270 = vmatprep.subr.mxu0 0.0
    %271 = vmatpush1.msra.mxu0 %v79
    %272 = vmatprep.subr.mxu0 0.0
    %273 = vmatpush1.msra.mxu0 0.0
    %274 = vmatprep.subr.mxu0 0.0
    %275 = vmatpush1.msra.mxu0 0.0
    %276 = vmatprep.subr.mxu0 0.0
    %277 = vmatpush1.msra.mxu0 0.0
    %278 = vmatprep.subr.mxu0 0.0
    %279 = vmatpush1.msra.mxu0 0.0
    %280 = vmatprep.subr.mxu0 0.0
    %281 = vmatpush1.msra.mxu0 0.0
    %282 = vmatprep.subr.mxu0 0.0
    %283 = vmatpush1.msra.mxu0 0.0
    %284 = vmatprep.subr.mxu0 0.0
    %285 = vmatpush1.msra.mxu0 0.0
    %286 = vmatprep.subr.mxu0 0.0
    %287 = vmatpush1.msra.mxu0 0.0
    %288 = vmatprep.subr.mxu0 0.0
    %289 = vmatpush1.msra.mxu0 0.0
    %290 = vmatprep.subr.mxu0 0.0
    %291 = vmatpush1.msra.mxu0 0.0
    %292 = vmatprep.subr.mxu0 0.0
    %293 = vmatpush1.msra.mxu0 0.0
    %294 = vmatprep.subr.mxu0 0.0
    %295 = vmatpush1.msra.mxu0 0.0
    %296 = vmatprep.subr.mxu0 0.0
    %297 = vmatpush1.msra.mxu0 0.0
    %298 = vmatprep.subr.mxu0 0.0
    %299 = vmatpush1.msra.mxu0 0.0
    %300 = vmatprep.subr.mxu0 0.0
    %301 = vmatpush1.msra.mxu0 0.0
    %302 = vmatprep.subr.mxu0 0.0
    %303 = vmatpush1.msra.mxu0 0.0
    %304 = vmatprep.mubr.f32.mxu0 0.0
    %305 = vmatmul.mubr.f32.gmra.mrb[0].mxu0 %v238
    %v306 = vpop.f32.mrb[0].mxu0
    %v307 = vadd.f32 0.0, %v306
    %v308 = vpop.f32.mrb[0].mxu0
    %309 = vdwg.mxu0
    %v310 = vadd.f32 %v239, %v307
    %v311 = vtanh.pop %v310
    %s312 = smul.u32 0, 8
    %p313 = scmp.lt.s32.totalorder %s312, 8
    %s314 = scalar_select %p313, 1, 0
    %v315 = vstv %s314
    %vm316 = vcmp.eq.s32.totalorder %v315, 1
    %v317 = vsel %vm316, %v311, %v238
    %318 = vst [vmem:[#allocation2] sm:$0xff] %v317
    %319 = vst [vmem:[#allocation3] sm:$0xff] %v317
    %v320 = vld [vmem:[#allocation2] sm:$0xff]
    %s321 = scalar_lea.vmem [#allocation3], 8
    %v322 = vld [vmem:[%s321] sm:$0xff]
    %323 = vmatprep.subr.mxu0 0.0
    %324 = vmatpush1.msra.mxu0 %v64
    %325 = vmatprep.subr.mxu0 0.0
    %326 = vmatpush1.msra.mxu0 %v65
    %327 = vmatprep.subr.mxu0 0.0
    %328 = vmatpush1.msra.mxu0 %v66
    %329 = vmatprep.subr.mxu0 0.0
    %330 = vmatpush1.msra.mxu0 %v67
    %331 = vmatprep.subr.mxu0 0.0
    %332 = vmatpush1.msra.mxu0 %v68
    %333 = vmatprep.subr.mxu0 0.0
    %334 = vmatpush1.msra.mxu0 %v69
    %335 = vmatprep.subr.mxu0 0.0
    %336 = vmatpush1.msra.mxu0 %v70
    %337 = vmatprep.subr.mxu0 0.0
    %338 = vmatpush1.msra.mxu0 %v71
    %339 = vmatprep.subr.mxu0 0.0
    %340 = vmatpush1.msra.mxu0 %v72
    %341 = vmatprep.subr.mxu0 0.0
    %342 = vmatpush1.msra.mxu0 %v73
    %343 = vmatprep.subr.mxu0 0.0
    %344 = vmatpush1.msra.mxu0 %v74
    %345 = vmatprep.subr.mxu0 0.0
    %346 = vmatpush1.msra.mxu0 %v75
    %347 = vmatprep.subr.mxu0 0.0
    %348 = vmatpush1.msra.mxu0 %v76
    %349 = vmatprep.subr.mxu0 0.0
    %350 = vmatpush1.msra.mxu0 %v77
    %351 = vmatprep.subr.mxu0 0.0
    %352 = vmatpush1.msra.mxu0 %v78
    %353 = vmatprep.subr.mxu0 0.0
    %354 = vmatpush1.msra.mxu0 %v79
    %355 = vmatprep.subr.mxu0 0.0
    %356 = vmatpush1.msra.mxu0 0.0
    %357 = vmatprep.subr.mxu0 0.0
    %358 = vmatpush1.msra.mxu0 0.0
    %359 = vmatprep.subr.mxu0 0.0
    %360 = vmatpush1.msra.mxu0 0.0
    %361 = vmatprep.subr.mxu0 0.0
    %362 = vmatpush1.msra.mxu0 0.0
    %363 = vmatprep.subr.mxu0 0.0
    %364 = vmatpush1.msra.mxu0 0.0
    %365 = vmatprep.subr.mxu0 0.0
    %366 = vmatpush1.msra.mxu0 0.0
    %367 = vmatprep.subr.mxu0 0.0
    %368 = vmatpush1.msra.mxu0 0.0
    %369 = vmatprep.subr.mxu0 0.0
    %370 = vmatpush1.msra.mxu0 0.0
    %371 = vmatprep.subr.mxu0 0.0
    %372 = vmatpush1.msra.mxu0 0.0
    %373 = vmatprep.subr.mxu0 0.0
    %374 = vmatpush1.msra.mxu0 0.0
    %375 = vmatprep.subr.mxu0 0.0
    %376 = vmatpush1.msra.mxu0 0.0
    %377 = vmatprep.subr.mxu0 0.0
    %378 = vmatpush1.msra.mxu0 0.0
    %379 = vmatprep.subr.mxu0 0.0
    %380 = vmatpush1.msra.mxu0 0.0
    %381 = vmatprep.subr.mxu0 0.0
    %382 = vmatpush1.msra.mxu0 0.0
    %383 = vmatprep.subr.mxu0 0.0
    %384 = vmatpush1.msra.mxu0 0.0
    %385 = vmatprep.subr.mxu0 0.0
    %386 = vmatpush1.msra.mxu0 0.0
    %387 = vmatprep.mubr.f32.mxu0 0.0
    %388 = vmatmul.mubr.f32.gmra.mrb[0].mxu0 %v320
    %v389 = vpop.f32.mrb[0].mxu0
    %v390 = vadd.f32 0.0, %v389
    %v391 = vpop.f32.mrb[0].mxu0
    %392 = vdwg.mxu0
    %v393 = vadd.f32 %v322, %v390
    %v394 = vtanh.pop %v393
    %s395 = sadd.s32 %s312, 1
    %p396 = scmp.lt.s32.totalorder %s395, 8
    %s397 = scalar_select %p396, 1, 0
    %v398 = vstv %s397
    %vm399 = vcmp.eq.s32.totalorder %v398, 1
    %v400 = vsel %vm399, %v394, %v320
    %401 = vst [vmem:[#allocation2] sm:$0xff] %v400
    %402 = vst [vmem:[%s321] sm:$0xff] %v400
    %v403 = vld [vmem:[#allocation2] sm:$0xff]
    %s404 = scalar_lea.vmem [#allocation3], 16
    %v405 = vld [vmem:[%s404] sm:$0xff]
    %406 = vmatprep.subr.mxu0 0.0
    %407 = vmatpush1.msra.mxu0 %v64
    %408 = vmatprep.subr.mxu0 0.0
    %409 = vmatpush1.msra.mxu0 %v65
    %410 = vmatprep.subr.mxu0 0.0
    %411 = vmatpush1.msra.mxu0 %v66
    %412 = vmatprep.subr.mxu0 0.0
    %413 = vmatpush1.msra.mxu0 %v67
    %414 = vmatprep.subr.mxu0 0.0
    %415 = vmatpush1.msra.mxu0 %v68
    %416 = vmatprep.subr.mxu0 0.0
    %417 = vmatpush1.msra.mxu0 %v69
    %418 = vmatprep.subr.mxu0 0.0
    %419 = vmatpush1.msra.mxu0 %v70
    %420 = vmatprep.subr.mxu0 0.0
    %421 = vmatpush1.msra.mxu0 %v71
    %422 = vmatprep.subr.mxu0 0.0
    %423 = vmatpush1.msra.mxu0 %v72
    %424 = vmatprep.subr.mxu0 0.0
    %425 = vmatpush1.msra.mxu0 %v73
    %426 = vmatprep.subr.mxu0 0.0
    %427 = vmatpush1.msra.mxu0 %v74
    %428 = vmatprep.subr.mxu0 0.0
    %429 = vmatpush1.msra.mxu0 %v75
    %430 = vmatprep.subr.mxu0 0.0
    %431 = vmatpush1.msra.mxu0 %v76
    %432 = vmatprep.subr.mxu0 0.0
    %433 = vmatpush1.msra.mxu0 %v77
    %434 = vmatprep.subr.mxu0 0.0
    %435 = vmatpush1.msra.mxu0 %v78
    %436 = vmatprep.subr.mxu0 0.0
    %437 = vmatpush1.msra.mxu0 %v79
    %438 = vmatprep.subr.mxu0 0.0
    %439 = vmatpush1.msra.mxu0 0.0
    %440 = vmatprep.subr.mxu0 0.0
    %441 = vmatpush1.msra.mxu0 0.0
    %442 = vmatprep.subr.mxu0 0.0
    %443 = vmatpush1.msra.mxu0 0.0
    %444 = vmatprep.subr.mxu0 0.0
    %445 = vmatpush1.msra.mxu0 0.0
    %446 = vmatprep.subr.mxu0 0.0
    %447 = vmatpush1.msra.mxu0 0.0
    %448 = vmatprep.subr.mxu0 0.0
    %449 = vmatpush1.msra.mxu0 0.0
    %450 = vmatprep.subr.mxu0 0.0
    %451 = vmatpush1.msra.mxu0 0.0
    %452 = vmatprep.subr.mxu0 0.0
    %453 = vmatpush1.msra.mxu0 0.0
    %454 = vmatprep.subr.mxu0 0.0
    %455 = vmatpush1.msra.mxu0 0.0
    %456 = vmatprep.subr.mxu0 0.0
    %457 = vmatpush1.msra.mxu0 0.0
    %458 = vmatprep.subr.mxu0 0.0
    %459 = vmatpush1.msra.mxu0 0.0
    %460 = vmatprep.subr.mxu0 0.0
    %461 = vmatpush1.msra.mxu0 0.0
    %462 = vmatprep.subr.mxu0 0.0
    %463 = vmatpush1.msra.mxu0 0.0
    %464 = vmatprep.subr.mxu0 0.0
    %465 = vmatpush1.msra.mxu0 0.0
    %466 = vmatprep.subr.mxu0 0.0
    %467 = vmatpush1.msra.mxu0 0.0
    %468 = vmatprep.subr.mxu0 0.0
    %469 = vmatpush1.msra.mxu0 0.0
    %470 = vmatprep.mubr.f32.mxu0 0.0
    %471 = vmatmul.mubr.f32.gmra.mrb[0].mxu0 %v403
    %v472 = vpop.f32.mrb[0].mxu0
    %v473 = vadd.f32 0.0, %v472
    %v474 = vpop.f32.mrb[0].mxu0
    %475 = vdwg.mxu0
    %v476 = vadd.f32 %v405, %v473
    %v477 = vtanh.pop %v476
    %s478 = sadd.s32 %s312, 2
    %p479 = scmp.lt.s32.totalorder %s478, 8
    %s480 = scalar_select %p479, 1, 0
    %v481 = vstv %s480
    %vm482 = vcmp.eq.s32.totalorder %v481, 1
    %v483 = vsel %vm482, %v477, %v403
    %484 = vst [vmem:[#allocation2] sm:$0xff] %v483
    %485 = vst [vmem:[%s404] sm:$0xff] %v483
    %v486 = vld [vmem:[#allocation2] sm:$0xff]
    %s487 = scalar_lea.vmem [#allocation3], 24
    %v488 = vld [vmem:[%s487] sm:$0xff]
    %489 = vmatprep.subr.mxu0 0.0
    %490 = vmatpush1.msra.mxu0 %v64
    %491 = vmatprep.subr.mxu0 0.0
    %492 = vmatpush1.msra.mxu0 %v65
    %493 = vmatprep.subr.mxu0 0.0
    %494 = vmatpush1.msra.mxu0 %v66
    %495 = vmatprep.subr.mxu0 0.0
    %496 = vmatpush1.msra.mxu0 %v67
    %497 = vmatprep.subr.mxu0 0.0
    %498 = vmatpush1.msra.mxu0 %v68
    %499 = vmatprep.subr.mxu0 0.0
    %500 = vmatpush1.msra.mxu0 %v69
    %501 = vmatprep.subr.mxu0 0.0
    %502 = vmatpush1.msra.mxu0 %v70
    %503 = vmatprep.subr.mxu0 0.0
    %504 = vmatpush1.msra.mxu0 %v71
    %505 = vmatprep.subr.mxu0 0.0
    %506 = vmatpush1.msra.mxu0 %v72
    %507 = vmatprep.subr.mxu0 0.0
    %508 = vmatpush1.msra.mxu0 %v73
    %509 = vmatprep.subr.mxu0 0.0
    %510 = vmatpush1.msra.mxu0 %v74
    %511 = vmatprep.subr.mxu0 0.0
    %512 = vmatpush1.msra.mxu0 %v75
    %513 = vmatprep.subr.mxu0 0.0
    %514 = vmatpush1.msra.mxu0 %v76
    %515 = vmatprep.subr.mxu0 0.0
    %516 = vmatpush1.msra.mxu0 %v77
    %517 = vmatprep.subr.mxu0 0.0
    %518 = vmatpush1.msra.mxu0 %v78
    %519 = vmatprep.subr.mxu0 0.0
    %520 = vmatpush1.msra.mxu0 %v79
    %521 = vmatprep.subr.mxu0 0.0
    %522 = vmatpush1.msra.mxu0 0.0
    %523 = vmatprep.subr.mxu0 0.0
    %524 = vmatpush1.msra.mxu0 0.0
    %525 = vmatprep.subr.mxu0 0.0
    %526 = vmatpush1.msra.mxu0 0.0
    %527 = vmatprep.subr.mxu0 0.0
    %528 = vmatpush1.msra.mxu0 0.0
    %529 = vmatprep.subr.mxu0 0.0
    %530 = vmatpush1.msra.mxu0 0.0
    %531 = vmatprep.subr.mxu0 0.0
    %532 = vmatpush1.msra.mxu0 0.0
    %533 = vmatprep.subr.mxu0 0.0
    %534 = vmatpush1.msra.mxu0 0.0
    %535 = vmatprep.subr.mxu0 0.0
    %536 = vmatpush1.msra.mxu0 0.0
    %537 = vmatprep.subr.mxu0 0.0
    %538 = vmatpush1.msra.mxu0 0.0
    %539 = vmatprep.subr.mxu0 0.0
    %540 = vmatpush1.msra.mxu0 0.0
    %541 = vmatprep.subr.mxu0 0.0
    %542 = vmatpush1.msra.mxu0 0.0
    %543 = vmatprep.subr.mxu0 0.0
    %544 = vmatpush1.msra.mxu0 0.0
    %545 = vmatprep.subr.mxu0 0.0
    %546 = vmatpush1.msra.mxu0 0.0
    %547 = vmatprep.subr.mxu0 0.0
    %548 = vmatpush1.msra.mxu0 0.0
    %549 = vmatprep.subr.mxu0 0.0
    %550 = vmatpush1.msra.mxu0 0.0
    %551 = vmatprep.subr.mxu0 0.0
    %552 = vmatpush1.msra.mxu0 0.0
    %553 = vmatprep.mubr.f32.mxu0 0.0
    %554 = vmatmul.mubr.f32.gmra.mrb[0].mxu0 %v486
    %v555 = vpop.f32.mrb[0].mxu0
    %v556 = vadd.f32 0.0, %v555
    %v557 = vpop.f32.mrb[0].mxu0
    %558 = vdwg.mxu0
    %v559 = vadd.f32 %v488, %v556
    %v560 = vtanh.pop %v559
    %s561 = sadd.s32 %s312, 3
    %p562 = scmp.lt.s32.totalorder %s561, 8
    %s563 = scalar_select %p562, 1, 0
    %v564 = vstv %s563
    %vm565 = vcmp.eq.s32.totalorder %v564, 1
    %v566 = vsel %vm565, %v560, %v486
    %567 = vst [vmem:[#allocation2] sm:$0xff] %v566
    %568 = vst [vmem:[%s487] sm:$0xff] %v566
    %v569 = vld [vmem:[#allocation2] sm:$0xff]
    %s570 = scalar_lea.vmem [#allocation3], 32
    %v571 = vld [vmem:[%s570] sm:$0xff]
    %572 = vmatprep.subr.mxu0 0.0
    %573 = vmatpush1.msra.mxu0 %v64
    %574 = vmatprep.subr.mxu0 0.0
    %575 = vmatpush1.msra.mxu0 %v65
    %576 = vmatprep.subr.mxu0 0.0
    %577 = vmatpush1.msra.mxu0 %v66
    %578 = vmatprep.subr.mxu0 0.0
    %579 = vmatpush1.msra.mxu0 %v67
    %580 = vmatprep.subr.mxu0 0.0
    %581 = vmatpush1.msra.mxu0 %v68
    %582 = vmatprep.subr.mxu0 0.0
    %583 = vmatpush1.msra.mxu0 %v69
    %584 = vmatprep.subr.mxu0 0.0
    %585 = vmatpush1.msra.mxu0 %v70
    %586 = vmatprep.subr.mxu0 0.0
    %587 = vmatpush1.msra.mxu0 %v71
    %588 = vmatprep.subr.mxu0 0.0
    %589 = vmatpush1.msra.mxu0 %v72
    %590 = vmatprep.subr.mxu0 0.0
    %591 = vmatpush1.msra.mxu0 %v73
    %592 = vmatprep.subr.mxu0 0.0
    %593 = vmatpush1.msra.mxu0 %v74
    %594 = vmatprep.subr.mxu0 0.0
    %595 = vmatpush1.msra.mxu0 %v75
    %596 = vmatprep.subr.mxu0 0.0
    %597 = vmatpush1.msra.mxu0 %v76
    %598 = vmatprep.subr.mxu0 0.0
    %599 = vmatpush1.msra.mxu0 %v77
    %600 = vmatprep.subr.mxu0 0.0
    %601 = vmatpush1.msra.mxu0 %v78
    %602 = vmatprep.subr.mxu0 0.0
    %603 = vmatpush1.msra.mxu0 %v79
    %604 = vmatprep.subr.mxu0 0.0
    %605 = vmatpush1.msra.mxu0 0.0
    %606 = vmatprep.subr.mxu0 0.0
    %607 = vmatpush1.msra.mxu0 0.0
    %608 = vmatprep.subr.mxu0 0.0
    %609 = vmatpush1.msra.mxu0 0.0
    %610 = vmatprep.subr.mxu0 0.0
    %611 = vmatpush1.msra.mxu0 0.0
    %612 = vmatprep.subr.mxu0 0.0
    %613 = vmatpush1.msra.mxu0 0.0
    %614 = vmatprep.subr.mxu0 0.0
    %615 = vmatpush1.msra.mxu0 0.0
    %616 = vmatprep.subr.mxu0 0.0
    %617 = vmatpush1.msra.mxu0 0.0
    %618 = vmatprep.subr.mxu0 0.0
    %619 = vmatpush1.msra.mxu0 0.0
    %620 = vmatprep.subr.mxu0 0.0
    %621 = vmatpush1.msra.mxu0 0.0
    %622 = vmatprep.subr.mxu0 0.0
    %623 = vmatpush1.msra.mxu0 0.0
    %624 = vmatprep.subr.mxu0 0.0
    %625 = vmatpush1.msra.mxu0 0.0
    %626 = vmatprep.subr.mxu0 0.0
    %627 = vmatpush1.msra.mxu0 0.0
    %628 = vmatprep.subr.mxu0 0.0
    %629 = vmatpush1.msra.mxu0 0.0
    %630 = vmatprep.subr.mxu0 0.0
    %631 = vmatpush1.msra.mxu0 0.0
    %632 = vmatprep.subr.mxu0 0.0
    %633 = vmatpush1.msra.mxu0 0.0
    %634 = vmatprep.subr.mxu0 0.0
    %635 = vmatpush1.msra.mxu0 0.0
    %636 = vmatprep.mubr.f32.mxu0 0.0
    %637 = vmatmul.mubr.f32.gmra.mrb[0].mxu0 %v569
    %v638 = vpop.f32.mrb[0].mxu0
    %v639 = vadd.f32 0.0, %v638
    %v640 = vpop.f32.mrb[0].mxu0
    %641 = vdwg.mxu0
    %v642 = vadd.f32 %v571, %v639
    %v643 = vtanh.pop %v642
    %s644 = sadd.s32 %s312, 4
    %p645 = scmp.lt.s32.totalorder %s644, 8
    %s646 = scalar_select %p645, 1, 0
    %v647 = vstv %s646
    %vm648 = vcmp.eq.s32.totalorder %v647, 1
    %v649 = vsel %vm648, %v643, %v569
    %650 = vst [vmem:[#allocation2] sm:$0xff] %v649
    %651 = vst [vmem:[%s570] sm:$0xff] %v649
    %v652 = vld [vmem:[#allocation2] sm:$0xff]
    %s653 = scalar_lea.vmem [#allocation3], 40
    %v654 = vld [vmem:[%s653] sm:$0xff]
    %655 = vmatprep.subr.mxu0 0.0
    %656 = vmatpush1.msra.mxu0 %v64
    %657 = vmatprep.subr.mxu0 0.0
    %658 = vmatpush1.msra.mxu0 %v65
    %659 = vmatprep.subr.mxu0 0.0
    %660 = vmatpush1.msra.mxu0 %v66
    %661 = vmatprep.subr.mxu0 0.0
    %662 = vmatpush1.msra.mxu0 %v67
    %663 = vmatprep.subr.mxu0 0.0
    %664 = vmatpush1.msra.mxu0 %v68
    %665 = vmatprep.subr.mxu0 0.0
    %666 = vmatpush1.msra.mxu0 %v69
    %667 = vmatprep.subr.mxu0 0.0
    %668 = vmatpush1.msra.mxu0 %v70
    %669 = vmatprep.subr.mxu0 0.0
    %670 = vmatpush1.msra.mxu0 %v71
    %671 = vmatprep.subr.mxu0 0.0
    %672 = vmatpush1.msra.mxu0 %v72
    %673 = vmatprep.subr.mxu0 0.0
    %674 = vmatpush1.msra.mxu0 %v73
    %675 = vmatprep.subr.mxu0 0.0
    %676 = vmatpush1.msra.mxu0 %v74
    %677 = vmatprep.subr.mxu0 0.0
    %678 = vmatpush1.msra.mxu0 %v75
    %679 = vmatprep.subr.mxu0 0.0
    %680 = vmatpush1.msra.mxu0 %v76
    %681 = vmatprep.subr.mxu0 0.0
    %682 = vmatpush1.msra.mxu0 %v77
    %683 = vmatprep.subr.mxu0 0.0
    %684 = vmatpush1.msra.mxu0 %v78
    %685 = vmatprep.subr.mxu0 0.0
    %686 = vmatpush1.msra.mxu0 %v79
    %687 = vmatprep.subr.mxu0 0.0
    %688 = vmatpush1.msra.mxu0 0.0
    %689 = vmatprep.subr.mxu0 0.0
    %690 = vmatpush1.msra.mxu0 0.0
    %691 = vmatprep.subr.mxu0 0.0
    %692 = vmatpush1.msra.mxu0 0.0
    %693 = vmatprep.subr.mxu0 0.0
    %694 = vmatpush1.msra.mxu0 0.0
    %695 = vmatprep.subr.mxu0 0.0
    %696 = vmatpush1.msra.mxu0 0.0
    %697 = vmatprep.subr.mxu0 0.0
    %698 = vmatpush1.msra.mxu0 0.0
    %699 = vmatprep.subr.mxu0 0.0
    %700 = vmatpush1.msra.mxu0 0.0
    %701 = vmatprep.subr.mxu0 0.0
    %702 = vmatpush1.msra.mxu0 0.0
    %703 = vmatprep.subr.mxu0 0.0
    %704 = vmatpush1.msra.mxu0 0.0
    %705 = vmatprep.subr.mxu0 0.0
    %706 = vmatpush1.msra.mxu0 0.0
    %707 = vmatprep.subr.mxu0 0.0
    %708 = vmatpush1.msra.mxu0 0.0
    %709 = vmatprep.subr.mxu0 0.0
    %710 = vmatpush1.msra.mxu0 0.0
    %711 = vmatprep.subr.mxu0 0.0
    %712 = vmatpush1.msra.mxu0 0.0
    %713 = vmatprep.subr.mxu0 0.0
    %714 = vmatpush1.msra.mxu0 0.0
    %715 = vmatprep.subr.mxu0 0.0
    %716 = vmatpush1.msra.mxu0 0.0
    %717 = vmatprep.subr.mxu0 0.0
    %718 = vmatpush1.msra.mxu0 0.0
    %719 = vmatprep.mubr.f32.mxu0 0.0
    %720 = vmatmul.mubr.f32.gmra.mrb[0].mxu0 %v652
    %v721 = vpop.f32.mrb[0].mxu0
    %v722 = vadd.f32 0.0, %v721
    %v723 = vpop.f32.mrb[0].mxu0
    %724 = vdwg.mxu0
    %v725 = vadd.f32 %v654, %v722
    %v726 = vtanh.pop %v725
    %s727 = sadd.s32 %s312, 5
    %p728 = scmp.lt.s32.totalorder %s727, 8
    %s729 = scalar_select %p728, 1, 0
    %v730 = vstv %s729
    %vm731 = vcmp.eq.s32.totalorder %v730, 1
    %v732 = vsel %vm731, %v726, %v652
    %733 = vst [vmem:[#allocation2] sm:$0xff] %v732
    %734 = vst [vmem:[%s653] sm:$0xff] %v732
    %v735 = vld [vmem:[#allocation2] sm:$0xff]
    %s736 = scalar_lea.vmem [#allocation3], 48
    %v737 = vld [vmem:[%s736] sm:$0xff]
    %738 = vmatprep.subr.mxu0 0.0
    %739 = vmatpush1.msra.mxu0 %v64
    %740 = vmatprep.subr.mxu0 0.0
    %741 = vmatpush1.msra.mxu0 %v65
    %742 = vmatprep.subr.mxu0 0.0
    %743 = vmatpush1.msra.mxu0 %v66
    %744 = vmatprep.subr.mxu0 0.0
    %745 = vmatpush1.msra.mxu0 %v67
    %746 = vmatprep.subr.mxu0 0.0
    %747 = vmatpush1.msra.mxu0 %v68
    %748 = vmatprep.subr.mxu0 0.0
    %749 = vmatpush1.msra.mxu0 %v69
    %750 = vmatprep.subr.mxu0 0.0
    %751 = vmatpush1.msra.mxu0 %v70
    %752 = vmatprep.subr.mxu0 0.0
    %753 = vmatpush1.msra.mxu0 %v71
    %754 = vmatprep.subr.mxu0 0.0
    %755 = vmatpush1.msra.mxu0 %v72
    %756 = vmatprep.subr.mxu0 0.0
    %757 = vmatpush1.msra.mxu0 %v73
    %758 = vmatprep.subr.mxu0 0.0
    %759 = vmatpush1.msra.mxu0 %v74
    %760 = vmatprep.subr.mxu0 0.0
    %761 = vmatpush1.msra.mxu0 %v75
    %762 = vmatprep.subr.mxu0 0.0
    %763 = vmatpush1.msra.mxu0 %v76
    %764 = vmatprep.subr.mxu0 0.0
    %765 = vmatpush1.msra.mxu0 %v77
    %766 = vmatprep.subr.mxu0 0.0
    %767 = vmatpush1.msra.mxu0 %v78
    %768 = vmatprep.subr.mxu0 0.0
    %769 = vmatpush1.msra.mxu0 %v79
    %770 = vmatprep.subr.mxu0 0.0
    %771 = vmatpush1.msra.mxu0 0.0
    %772 = vmatprep.subr.mxu0 0.0
    %773 = vmatpush1.msra.mxu0 0.0
    %774 = vmatprep.subr.mxu0 0.0
    %775 = vmatpush1.msra.mxu0 0.0
    %776 = vmatprep.subr.mxu0 0.0
    %777 = vmatpush1.msra.mxu0 0.0
    %778 = vmatprep.subr.mxu0 0.0
    %779 = vmatpush1.msra.mxu0 0.0
    %780 = vmatprep.subr.mxu0 0.0
    %781 = vmatpush1.msra.mxu0 0.0
    %782 = vmatprep.subr.mxu0 0.0
    %783 = vmatpush1.msra.mxu0 0.0
    %784 = vmatprep.subr.mxu0 0.0
    %785 = vmatpush1.msra.mxu0 0.0
    %786 = vmatprep.subr.mxu0 0.0
    %787 = vmatpush1.msra.mxu0 0.0
    %788 = vmatprep.subr.mxu0 0.0
    %789 = vmatpush1.msra.mxu0 0.0
    %790 = vmatprep.subr.mxu0 0.0
    %791 = vmatpush1.msra.mxu0 0.0
    %792 = vmatprep.subr.mxu0 0.0
    %793 = vmatpush1.msra.mxu0 0.0
    %794 = vmatprep.subr.mxu0 0.0
    %795 = vmatpush1.msra.mxu0 0.0
    %796 = vmatprep.subr.mxu0 0.0
    %797 = vmatpush1.msra.mxu0 0.0
    %798 = vmatprep.subr.mxu0 0.0
    %799 = vmatpush1.msra.mxu0 0.0
    %800 = vmatprep.subr.mxu0 0.0
    %801 = vmatpush1.msra.mxu0 0.0
    %802 = vmatprep.mubr.f32.mxu0 0.0
    %803 = vmatmul.mubr.f32.gmra.mrb[0].mxu0 %v735
    %v804 = vpop.f32.mrb[0].mxu0
    %v805 = vadd.f32 0.0, %v804
    %v806 = vpop.f32.mrb[0].mxu0
    %807 = vdwg.mxu0
    %v808 = vadd.f32 %v737, %v805
    %v809 = vtanh.pop %v808
    %s810 = sadd.s32 %s312, 6
    %p811 = scmp.lt.s32.totalorder %s810, 8
    %s812 = scalar_select %p811, 1, 0
    %v813 = vstv %s812
    %vm814 = vcmp.eq.s32.totalorder %v813, 1
    %v815 = vsel %vm814, %v809, %v735
    %816 = vst [vmem:[#allocation2] sm:$0xff] %v815
    %817 = vst [vmem:[%s736] sm:$0xff] %v815
    %v818 = vld [vmem:[#allocation2] sm:$0xff]
    %s819 = scalar_lea.vmem [#allocation3], 56
    %v820 = vld [vmem:[%s819] sm:$0xff]
    %821 = vmatprep.subr.mxu0 0.0
    %822 = vmatpush1.msra.mxu0 %v64
    %823 = vmatprep.subr.mxu0 0.0
    %824 = vmatpush1.msra.mxu0 %v65
    %825 = vmatprep.subr.mxu0 0.0
    %826 = vmatpush1.msra.mxu0 %v66
    %827 = vmatprep.subr.mxu0 0.0
    %828 = vmatpush1.msra.mxu0 %v67
    %829 = vmatprep.subr.mxu0 0.0
    %830 = vmatpush1.msra.mxu0 %v68
    %831 = vmatprep.subr.mxu0 0.0
    %832 = vmatpush1.msra.mxu0 %v69
    %833 = vmatprep.subr.mxu0 0.0
    %834 = vmatpush1.msra.mxu0 %v70
    %835 = vmatprep.subr.mxu0 0.0
    %836 = vmatpush1.msra.mxu0 %v71
    %837 = vmatprep.subr.mxu0 0.0
    %838 = vmatpush1.msra.mxu0 %v72
    %839 = vmatprep.subr.mxu0 0.0
    %840 = vmatpush1.msra.mxu0 %v73
    %841 = vmatprep.subr.mxu0 0.0
    %842 = vmatpush1.msra.mxu0 %v74
    %843 = vmatprep.subr.mxu0 0.0
    %844 = vmatpush1.msra.mxu0 %v75
    %845 = vmatprep.subr.mxu0 0.0
    %846 = vmatpush1.msra.mxu0 %v76
    %847 = vmatprep.subr.mxu0 0.0
    %848 = vmatpush1.msra.mxu0 %v77
    %849 = vmatprep.subr.mxu0 0.0
    %850 = vmatpush1.msra.mxu0 %v78
    %851 = vmatprep.subr.mxu0 0.0
    %852 = vmatpush1.msra.mxu0 %v79
    %853 = vmatprep.subr.mxu0 0.0
    %854 = vmatpush1.msra.mxu0 0.0
    %855 = vmatprep.subr.mxu0 0.0
    %856 = vmatpush1.msra.mxu0 0.0
    %857 = vmatprep.subr.mxu0 0.0
    %858 = vmatpush1.msra.mxu0 0.0
    %859 = vmatprep.subr.mxu0 0.0
    %860 = vmatpush1.msra.mxu0 0.0
    %861 = vmatprep.subr.mxu0 0.0
    %862 = vmatpush1.msra.mxu0 0.0
    %863 = vmatprep.subr.mxu0 0.0
    %864 = vmatpush1.msra.mxu0 0.0
    %865 = vmatprep.subr.mxu0 0.0
    %866 = vmatpush1.msra.mxu0 0.0
    %867 = vmatprep.subr.mxu0 0.0
    %868 = vmatpush1.msra.mxu0 0.0
    %869 = vmatprep.subr.mxu0 0.0
    %870 = vmatpush1.msra.mxu0 0.0
    %871 = vmatprep.subr.mxu0 0.0
    %872 = vmatpush1.msra.mxu0 0.0
    %873 = vmatprep.subr.mxu0 0.0
    %874 = vmatpush1.msra.mxu0 0.0
    %875 = vmatprep.subr.mxu0 0.0
    %876 = vmatpush1.msra.mxu0 0.0
    %877 = vmatprep.subr.mxu0 0.0
    %878 = vmatpush1.msra.mxu0 0.0
    %879 = vmatprep.subr.mxu0 0.0
    %880 = vmatpush1.msra.mxu0 0.0
    %881 = vmatprep.subr.mxu0 0.0
    %882 = vmatpush1.msra.mxu0 0.0
    %883 = vmatprep.subr.mxu0 0.0
    %884 = vmatpush1.msra.mxu0 0.0
    %885 = vmatprep.mubr.f32.mxu0 0.0
    %886 = vmatmul.mubr.f32.gmra.mrb[0].mxu0 %v818
    %v887 = vpop.f32.mrb[0].mxu0
    %v888 = vadd.f32 0.0, %v887
    %v889 = vpop.f32.mrb[0].mxu0
    %890 = vdwg.mxu0
    %v891 = vadd.f32 %v820, %v888
    %v892 = vtanh.pop %v891
    %s893 = sadd.s32 %s312, 7
    %p894 = scmp.lt.s32.totalorder %s893, 8
    %s895 = scalar_select %p894, 1, 0
    %v896 = vstv %s895
    %vm897 = vcmp.eq.s32.totalorder %v896, 1
    %v898 = vsel %vm897, %v892, %v818
    %899 = vst [vmem:[#allocation2] sm:$0xff] %v898
    %900 = vst [vmem:[%s819] sm:$0xff] %v898
    %v901 = vld [vmem:[#allocation3] sm:$0xff]
    %v902 = vld [vmem:[#allocation3 + $0x8] sm:$0xff]
    %v903 = vld [vmem:[#allocation3 + $0x10] sm:$0xff]
    %v904 = vld [vmem:[#allocation3 + $0x18] sm:$0xff]
    %v905 = vld [vmem:[#allocation3 + $0x20] sm:$0xff]
    %v906 = vld [vmem:[#allocation3 + $0x28] sm:$0xff]
    %v907 = vld [vmem:[#allocation3 + $0x30] sm:$0xff]
    %v908 = vld [vmem:[#allocation3 + $0x38] sm:$0xff]
    %v909 = vld [vmem:[#allocation7] sm:$0xff]
    %v910 = vld [vmem:[#allocation7 + $0x8] sm:$0xff]
    %v911 = vld [vmem:[#allocation7 + $0x10] sm:$0xff]
    %v912 = vld [vmem:[#allocation7 + $0x18] sm:$0xff]
    %v913 = vld [vmem:[#allocation7 + $0x20] sm:$0xff]
    %v914 = vld [vmem:[#allocation7 + $0x28] sm:$0xff]
    %v915 = vld [vmem:[#allocation7 + $0x30] sm:$0xff]
    %v916 = vld [vmem:[#allocation7 + $0x38] sm:$0xff]
    %v917 = vld [vmem:[#allocation7 + $0x40] sm:$0xff]
    %v918 = vld [vmem:[#allocation7 + $0x48] sm:$0xff]
    %v919 = vld [vmem:[#allocation7 + $0x50] sm:$0xff]
    %v920 = vld [vmem:[#allocation7 + $0x58] sm:$0xff]
    %v921 = vld [vmem:[#allocation7 + $0x60] sm:$0xff]
    %v922 = vld [vmem:[#allocation7 + $0x68] sm:$0xff]
    %v923 = vld [vmem:[#allocation7 + $0x70] sm:$0xff]
    %v924 = vld [vmem:[#allocation7 + $0x78] sm:$0xff]
    %v925 = vld [vmem:[%s5] sm:$0x1]
    %v927 = vlaneseq
    %v928 = vshrl.u32 %v927, 7
    %v929 = vsub.s32 0, %v928
    %v930 = vrot.slane %v925, %v929
    %932 = vmatprep.subr.mxu0 0.0
    %933 = vmatpush1.msra.mxu0 %v909
    %934 = vmatprep.subr.mxu0 0.0
    %935 = vmatpush1.msra.mxu0 %v910
    %936 = vmatprep.subr.mxu0 0.0
    %937 = vmatpush1.msra.mxu0 %v911
    %938 = vmatprep.subr.mxu0 0.0
    %939 = vmatpush1.msra.mxu0 %v912
    %940 = vmatprep.subr.mxu0 0.0
    %941 = vmatpush1.msra.mxu0 %v913
    %942 = vmatprep.subr.mxu0 0.0
    %943 = vmatpush1.msra.mxu0 %v914
    %944 = vmatprep.subr.mxu0 0.0
    %945 = vmatpush1.msra.mxu0 %v915
    %946 = vmatprep.subr.mxu0 0.0
    %947 = vmatpush1.msra.mxu0 %v916
    %948 = vmatprep.subr.mxu0 0.0
    %949 = vmatpush1.msra.mxu0 %v917
    %950 = vmatprep.subr.mxu0 0.0
    %951 = vmatpush1.msra.mxu0 %v918
    %952 = vmatprep.subr.mxu0 0.0
    %953 = vmatpush1.msra.mxu0 %v919
    %954 = vmatprep.subr.mxu0 0.0
    %955 = vmatpush1.msra.mxu0 %v920
    %956 = vmatprep.subr.mxu0 0.0
    %957 = vmatpush1.msra.mxu0 %v921
    %958 = vmatprep.subr.mxu0 0.0
    %959 = vmatpush1.msra.mxu0 %v922
    %960 = vmatprep.subr.mxu0 0.0
    %961 = vmatpush1.msra.mxu0 %v923
    %962 = vmatprep.subr.mxu0 0.0
    %963 = vmatpush1.msra.mxu0 %v924
    %964 = vmatprep.subr.mxu0 0.0
    %965 = vmatpush1.msra.mxu0 0.0
    %966 = vmatprep.subr.mxu0 0.0
    %967 = vmatpush1.msra.mxu0 0.0
    %968 = vmatprep.subr.mxu0 0.0
    %969 = vmatpush1.msra.mxu0 0.0
    %970 = vmatprep.subr.mxu0 0.0
    %971 = vmatpush1.msra.mxu0 0.0
    %972 = vmatprep.subr.mxu0 0.0
    %973 = vmatpush1.msra.mxu0 0.0
    %974 = vmatprep.subr.mxu0 0.0
    %975 = vmatpush1.msra.mxu0 0.0
    %976 = vmatprep.subr.mxu0 0.0
    %977 = vmatpush1.msra.mxu0 0.0
    %978 = vmatprep.subr.mxu0 0.0
    %979 = vmatpush1.msra.mxu0 0.0
    %980 = vmatprep.subr.mxu0 0.0
    %981 = vmatpush1.msra.mxu0 0.0
    %982 = vmatprep.subr.mxu0 0.0
    %983 = vmatpush1.msra.mxu0 0.0
    %984 = vmatprep.subr.mxu0 0.0
    %985 = vmatpush1.msra.mxu0 0.0
    %986 = vmatprep.subr.mxu0 0.0
    %987 = vmatpush1.msra.mxu0 0.0
    %988 = vmatprep.subr.mxu0 0.0
    %989 = vmatpush1.msra.mxu0 0.0
    %990 = vmatprep.subr.mxu0 0.0
    %991 = vmatpush1.msra.mxu0 0.0
    %992 = vmatprep.subr.mxu0 0.0
    %993 = vmatpush1.msra.mxu0 0.0
    %994 = vmatprep.subr.mxu0 0.0
    %995 = vmatpush1.msra.mxu0 0.0
    %996 = vmatprep.mubr.f32.mxu0 0.0
    %997 = vmatmul.mubr.f32.gmra.mrb[0].mxu0 %v901
    %v998 = vpop.f32.mrb[0].mxu0
    %v999 = vadd.f32 %v930, %v998
    %v1000 = vpop.f32.mrb[0].mxu0
    %1001 = vmatprep.mubr.f32.mxu0 0.0
    %1002 = vmatmul.mubr.f32.gmra.mrb[0].mxu0 %v902
    %v1003 = vpop.f32.mrb[0].mxu0
    %v1004 = vadd.f32 %v930, %v1003
    %v1005 = vpop.f32.mrb[0].mxu0
    %1006 = vmatprep.mubr.f32.mxu0 0.0
    %1007 = vmatmul.mubr.f32.gmra.mrb[0].mxu0 %v903
    %v1008 = vpop.f32.mrb[0].mxu0
    %v1009 = vadd.f32 %v930, %v1008
    %v1010 = vpop.f32.mrb[0].mxu0
    %1011 = vmatprep.mubr.f32.mxu0 0.0
    %1012 = vmatmul.mubr.f32.gmra.mrb[0].mxu0 %v904
    %v1013 = vpop.f32.mrb[0].mxu0
    %v1014 = vadd.f32 %v930, %v1013
    %v1015 = vpop.f32.mrb[0].mxu0
    %1016 = vmatprep.mubr.f32.mxu0 0.0
    %1017 = vmatmul.mubr.f32.gmra.mrb[0].mxu0 %v905
    %v1018 = vpop.f32.mrb[0].mxu0
    %v1019 = vadd.f32 %v930, %v1018
    %v1020 = vpop.f32.mrb[0].mxu0
    %1021 = vmatprep.mubr.f32.mxu0 0.0
    %1022 = vmatmul.mubr.f32.gmra.mrb[0].mxu0 %v906
    %v1023 = vpop.f32.mrb[0].mxu0
    %v1024 = vadd.f32 %v930, %v1023
    %v1025 = vpop.f32.mrb[0].mxu0
    %1026 = vmatprep.mubr.f32.mxu0 0.0
    %1027 = vmatmul.mubr.f32.gmra.mrb[0].mxu0 %v907
    %v1028 = vpop.f32.mrb[0].mxu0
    %v1029 = vadd.f32 %v930, %v1028
    %v1030 = vpop.f32.mrb[0].mxu0
    %1031 = vmatprep.mubr.f32.mxu0 0.0
    %1032 = vmatmul.mubr.f32.gmra.mrb[0].mxu0 %v908
    %v1033 = vpop.f32.mrb[0].mxu0
    %v1034 = vadd.f32 %v930, %v1033
    %v1035 = vpop.f32.mrb[0].mxu0
    %1036 = vdwg.mxu0
    %1037 = vmax.xlane.f32.xlu0 %v999
    %v1038 = vpop.xlane.xlu0 %1037
    %1039 = vmax.xlane.f32.xlu0 %v1004
    %v1040 = vpop.xlane.xlu0 %1039
    %1041 = vmax.xlane.f32.xlu0 %v1009
    %v1042 = vpop.xlane.xlu0 %1041
    %1043 = vmax.xlane.f32.xlu0 %v1014
    %v1044 = vpop.xlane.xlu0 %1043
    %1045 = vmax.xlane.f32.xlu0 %v1019
    %v1046 = vpop.xlane.xlu0 %1045
    %1047 = vmax.xlane.f32.xlu0 %v1024
    %v1048 = vpop.xlane.xlu0 %1047
    %1049 = vmax.xlane.f32.xlu0 %v1029
    %v1050 = vpop.xlane.xlu0 %1049
    %1051 = vmax.xlane.f32.xlu0 %v1034
    %v1052 = vpop.xlane.xlu0 %1051
    %v1053 = vsub.f32 %v999, %v1038
    %v1054 = vsub.f32 %v1004, %v1040
    %v1055 = vsub.f32 %v1009, %v1042
    %v1056 = vsub.f32 %v1014, %v1044
    %v1057 = vsub.f32 %v1019, %v1046
    %v1058 = vsub.f32 %v1024, %v1048
    %v1059 = vsub.f32 %v1029, %v1050
    %v1060 = vsub.f32 %v1034, %v1052
    %v1061 = vmul.f32 %v1053, 1.442695
    %v1062 = vpow.pop %v1061
    %v1063 = vmul.f32 %v1054, 1.442695
    %v1064 = vpow.pop %v1063
    %v1065 = vmul.f32 %v1055, 1.442695
    %v1066 = vpow.pop %v1065
    %v1067 = vmul.f32 %v1056, 1.442695
    %v1068 = vpow.pop %v1067
    %v1069 = vmul.f32 %v1057, 1.442695
    %v1070 = vpow.pop %v1069
    %v1071 = vmul.f32 %v1058, 1.442695
    %v1072 = vpow.pop %v1071
    %v1073 = vmul.f32 %v1059, 1.442695
    %v1074 = vpow.pop %v1073
    %v1075 = vmul.f32 %v1060, 1.442695
    %v1076 = vpow.pop %v1075
    %1077 = vadd.xlane.f32.xlu0 %v1062
    %v1078 = vpop.xlane.xlu0 %1077
    %1079 = vadd.xlane.f32.xlu0 %v1064
    %v1080 = vpop.xlane.xlu0 %1079
    %1081 = vadd.xlane.f32.xlu0 %v1066
    %v1082 = vpop.xlane.xlu0 %1081
    %1083 = vadd.xlane.f32.xlu0 %v1068
    %v1084 = vpop.xlane.xlu0 %1083
    %1085 = vadd.xlane.f32.xlu0 %v1070
    %v1086 = vpop.xlane.xlu0 %1085
    %1087 = vadd.xlane.f32.xlu0 %v1072
    %v1088 = vpop.xlane.xlu0 %1087
    %1089 = vadd.xlane.f32.xlu0 %v1074
    %v1090 = vpop.xlane.xlu0 %1089
    %1091 = vadd.xlane.f32.xlu0 %v1076
    %v1092 = vpop.xlane.xlu0 %1091
    %v1093 = vrcp.pop %v1078
    %v1094 = vmul.f32 %v1062, %v1093
    %v1095 = vrcp.pop %v1080
    %v1096 = vmul.f32 %v1064, %v1095
    %v1097 = vrcp.pop %v1082
    %v1098 = vmul.f32 %v1066, %v1097
    %v1099 = vrcp.pop %v1084
    %v1100 = vmul.f32 %v1068, %v1099
    %v1101 = vrcp.pop %v1086
    %v1102 = vmul.f32 %v1070, %v1101
    %v1103 = vrcp.pop %v1088
    %v1104 = vmul.f32 %v1072, %v1103
    %v1105 = vrcp.pop %v1090
    %v1106 = vmul.f32 %v1074, %v1105
    %v1107 = vrcp.pop %v1092
    %v1108 = vmul.f32 %v1076, %v1107
    %1109 = vst [vmem:[#allocation9] sm:$0xff] %v1094
    %1110 = vst [vmem:[#allocation9 + $0x8] sm:$0xff] %v1096
    %1111 = vst [vmem:[#allocation9 + $0x10] sm:$0xff] %v1098
    %1112 = vst [vmem:[#allocation9 + $0x18] sm:$0xff] %v1100
    %1113 = vst [vmem:[#allocation9 + $0x20] sm:$0xff] %v1102
    %1114 = vst [vmem:[#allocation9 + $0x28] sm:$0xff] %v1104
    %1115 = vst [vmem:[#allocation9 + $0x30] sm:$0xff] %v1106
    %1116 = vst [vmem:[#allocation9 + $0x38] sm:$0xff] %v1108
    %v1117 = vld [vmem:[#allocation2] sm:$0xff]
    %1118 = vst [vmem:[#allocation10] sm:$0xff] %v1117
    // Predicated region
    $region42: #{tpu_custom_call.1} parent=1 // pred_check
      _
    $region43: #{tpu_custom_call.1} parent=1 // pred_check_branch
      %1120 = sbr.rel (0) target = $region45
    $region44: #{tpu_custom_call.1} parent=1 // pred_region
      %s1122 = ssub.s32 1024, 1024
      %1123 = vsyncadd [#allocation6], %s1122
      %s1124 = sshll.u32 [#allocation9], 4
      %s1125 = int_to_ptr.vmem [resolvable:$true] %s1124
      %1130 = dma.vmem_to_hbm [thread:$0]  %s1125, 1024, %s7, [#allocation6], 128, 128, 8
    $region45: #{tpu_custom_call.1} parent=1 // pred_fallthru
      _
    // Predicated region
    $region46: #{tpu_custom_call.1} parent=1 // pred_check
      _
    $region47: #{tpu_custom_call.1} parent=1 // pred_check_branch
      %1132 = sbr.rel (0) target = $region49
    $region48: #{tpu_custom_call.1} parent=1 // pred_region
      %s1134 = ssub.s32 128, 128
      %1135 = vsyncadd [#allocation11], %s1134
      %s1137 = sshll.u32 [#allocation10], 4
      %s1138 = int_to_ptr.vmem [resolvable:$true] %s1137
      %1140 = dma.vmem_to_hbm [thread:$0]  %s1138, 128, %s8, [#allocation11]
    $region49: #{tpu_custom_call.1} parent=1 // pred_fallthru
      _
    // Predicated region
    $region50: #{tpu_custom_call.1} parent=1 // pred_check
      _
    $region51: #{tpu_custom_call.1} parent=1 // pred_check_branch
      %1142 = sbr.rel (0) target = $region53
    $region52: #{tpu_custom_call.1} parent=1 // pred_region
      %1143 = dma.done [#allocation6], 1024
    $region53: #{tpu_custom_call.1} parent=1 // pred_fallthru
      _
    // Predicated region
    $region54: #{tpu_custom_call.1} parent=1 // pred_check
      _
    $region55: #{tpu_custom_call.1} parent=1 // pred_check_branch
      %1145 = sbr.rel (0) target = $region57
    $region56: #{tpu_custom_call.1} parent=1 // pred_region
      %1146 = dma.done [#allocation11], 128
    $region57: #{tpu_custom_call.1} parent=1 // pred_fallthru
      _
    %1147 = vsyncpa [#allocation5], 1
    %1148 = vsyncpa [#allocation8], 1
    %1149 = vsyncpa [#allocation6], 1
    %1150 = vsyncpa [#allocation11], 1

</llo_original>
